<compile_context>
chip_gen: v7x
topology: tpu7x:2x2x1
jax: 0.10.0
libtpu: 0.0.40
codegen_flags: <defaults>
</compile_context>

<pallas_src>
import functools

import jax
import jax.numpy as jnp
from jax.experimental import pallas as pl
from jax.experimental.pallas import tpu as pltpu


def _round_up(x, m):
    return ((x + m - 1) // m) * m


def _fcn_head_kernel(x_ref, w3_ref, bias_ref, wl_ref, bl_ref, o_ref, acc_ref,
                     *, width, tile_h):
    """One (batch, H-tile) output block per grid step.

    x_ref    : ((H+2)*W, Cin)      bf16 NHWC input, flattened, one zero halo
                                   row above and below (padded H axis).
    w3_ref   : (3, 3, Cin, Cint_p) bf16 3x3 conv weights, BN scale folded in.
    bias_ref : (1, Cint_p)         f32 folded BN bias (zero in padded lanes).
    wl_ref   : (Cint_p, Cout_p)    bf16 1x1 conv weights (conv6 or conv7).
    bl_ref   : (1, Cout_p)         f32 1x1 conv bias.
    o_ref    : (TH*W, Cout_p)      bf16 lane-dense output tile.
    acc_ref  : (TH*W, Cint_p)      f32 flat accumulator scratch (no halo).
    """
    rows, _ = acc_ref.shape
    ht = pl.program_id(1)

    # Column coordinate of every flattened row (loop-invariant). The two edge
    # masks kill both the image W boundary and the cross-row wrap of the flat
    # +-1 rolls.
    col = jax.lax.broadcasted_iota(jnp.int32, (rows, 1), 0) % width
    mask_l = col > 0            # kx=0 tap reads column w-1
    mask_r = col < width - 1    # kx=2 tap reads column w+1

    # --- conv5: 3x3 conv, padding=1, no bias (BN scale pre-folded) ----------
    for ky in range(3):
        # Padded-image rows [h0+ky, h0+ky+TH) == original rows [h0+ky-1, ...).
        start = pl.multiple_of((ht * tile_h + ky) * width, width)
        xk = x_ref[pl.ds(start, rows), :]                        # (rows, Cin)

        # centre tap (kx=1)
        g = jnp.dot(xk, w3_ref[ky, 1], preferred_element_type=jnp.float32)
        # left tap (kx=0): out[., w] uses x[., w-1] -> roll result by +1
        s = jnp.dot(xk, w3_ref[ky, 0], preferred_element_type=jnp.float32)
        g = g + jnp.where(mask_l, pltpu.roll(s, shift=1, axis=0), 0.0)
        # right tap (kx=2): out[., w] uses x[., w+1] -> roll result by -1
        s = jnp.dot(xk, w3_ref[ky, 2], preferred_element_type=jnp.float32)
        g = g + jnp.where(mask_r, pltpu.roll(s, shift=rows - 1, axis=0), 0.0)

        if ky == 0:
            acc_ref[...] = g       # write, not +=: no zero-init pass needed
        else:
            acc_ref[...] += g

    # --- BatchNorm (eval, folded bias) + ReLU; Dropout2d(eval) = identity ---
    y = jnp.maximum(acc_ref[...] + bias_ref[...], 0.0)

    # --- conv6 / conv7: 1x1 conv (lane-dense MXU matmul) + bias --------------
    out = jnp.dot(y.astype(wl_ref.dtype), wl_ref[...],
                  preferred_element_type=jnp.float32) + bl_ref[...]
    o_ref[...] = out.astype(o_ref.dtype)


def prepare_params(params, eps=1e-5):
    """Fold eval-mode BatchNorm into the 3x3 conv, pad channels to the 128
    lane width, cast matmul operands to bf16.  Static for inference, so this
    runs once, outside the per-call forward."""
    w3 = jnp.asarray(params["w3"], jnp.float32)           # (3, 3, Cin, Cint)
    cin, cint = w3.shape[2], w3.shape[3]
    inv_std = jax.lax.rsqrt(params["bn_var"] + eps)
    scale = params["bn_gamma"] * inv_std                  # (Cint,)
    bias = params["bn_beta"] - params["bn_mean"] * scale  # (Cint,)
    w3_folded = w3 * scale[None, None, None, :]

    cint_p = _round_up(cint, 128)
    w3p = jnp.zeros((3, 3, cin, cint_p), jnp.bfloat16)
    w3p = w3p.at[..., :cint].set(w3_folded.astype(jnp.bfloat16))
    biasp = jnp.zeros((1, cint_p), jnp.float32).at[0, :cint].set(bias)

    def _pad_1x1(w, b):
        cout = w.shape[1]
        cout_p = _round_up(cout, 128)
        wp = jnp.zeros((cint_p, cout_p), jnp.bfloat16)
        wp = wp.at[:cint, :cout].set(w.astype(jnp.bfloat16))
        bp = jnp.zeros((1, cout_p), jnp.float32).at[0, :cout].set(b)
        return wp, bp

    w6p, b6p = _pad_1x1(params["w6"], params["b6"])
    w7p, b7p = _pad_1x1(params["w7"], params["b7"])
    return {"w3": w3p, "bias": biasp,
            "w6": w6p, "b6": b6p, "w7": w7p, "b7": b7p}


def _pick_tile_h(H, W):
    # Prefer ~8-row tiles: enough grid steps for megacore sharding and
    # pipelining while TH*W stays a sublane multiple.  Production shapes
    # should sweep this against the VMEM budget, not reuse the toy choice.
    for th in (8, 4, 2, 1):
        if H % th == 0 and (th * W) % 8 == 0:
            return th
    return H


def _vmem_limit_bytes(block_bytes):
    try:
        cap = int(pltpu.get_tpu_info().vmem_capacity_bytes) * 3 // 4
    except Exception:                    # query unavailable -> conservative
        cap = 48 * 1024 * 1024           # fits v7x's 64 MiB physical VMEM
    want = int(block_bytes * 1.5) + (1 << 20)
    return min(max(want, 32 * 1024 * 1024), cap)


@functools.partial(jax.jit, static_argnames=("out_channels", "rev", "tile_h"))
def fcn_head_forward(x_nchw, prepared, out_channels, rev=False, tile_h=None):
    """x_nchw: (N, Cin, H, W) float32. Returns (N, out_channels, H, W) f32."""
    N, Cin, H, W = x_nchw.shape
    w3p, biasp = prepared["w3"], prepared["bias"]
    cint_p = w3p.shape[3]
    wlp = prepared["w7"] if rev else prepared["w6"]
    blp = prepared["b7"] if rev else prepared["b6"]
    cout_p = wlp.shape[1]

    th = _pick_tile_h(H, W) if tile_h is None else tile_h
    n_ht = H // th
    rows = th * W

    # NCHW -> NHWC, one zero halo row above/below (so the kernel's ky row
    # offsets never leave the buffer and need no boundary masks), flatten the
    # spatial dims, cast to bf16 for the MXU.
    x = jnp.transpose(x_nchw, (0, 2, 3, 1)).astype(jnp.bfloat16)
    x = jnp.pad(x, ((0, 0), (1, 1), (0, 0), (0, 0)))
    x = x.reshape(N, (H + 2) * W, Cin)

    # VMEM budget from the actual (double-buffered) blocks + scratch.
    block_bytes = (
        2 * (H + 2) * W * Cin * 2             # x block (bf16)
        + 2 * w3p.size * 2 + 2 * wlp.size * 2 # weights (bf16)
        + 2 * biasp.size * 4 + 2 * blp.size * 4
        + 2 * rows * cout_p * 2               # output block (bf16)
        + rows * cint_p * 4)                  # accumulator scratch (f32)

    out = pl.pallas_call(
        functools.partial(_fcn_head_kernel, width=W, tile_h=th),
        out_shape=jax.ShapeDtypeStruct((N, H * W, cout_p), jnp.bfloat16),
        grid_spec=pltpu.PrefetchScalarGridSpec(
            num_scalar_prefetch=0,
            grid=(N, n_ht),
            in_specs=[
                # Whole padded image per batch element; constant over the
                # H-tile axis so it is only copied when n changes.
                pl.BlockSpec((None, (H + 2) * W, Cin), lambda n, h: (n, 0, 0)),
                pl.BlockSpec((3, 3, Cin, cint_p), lambda n, h: (0, 0, 0, 0)),
                pl.BlockSpec((1, cint_p), lambda n, h: (0, 0)),
                pl.BlockSpec((cint_p, cout_p), lambda n, h: (0, 0)),
                pl.BlockSpec((1, cout_p), lambda n, h: (0, 0)),
            ],
            out_specs=pl.BlockSpec((None, rows, cout_p), lambda n, h: (n, h, 0)),
            scratch_shapes=[pltpu.VMEM((rows, cint_p), jnp.float32)],
        ),
        compiler_params=pltpu.CompilerParams(
            dimension_semantics=("parallel", "parallel"),
            vmem_limit_bytes=_vmem_limit_bytes(block_bytes)),
    )(x, w3p, biasp, wlp, blp)

    # (N, H*W, Cout_p) bf16 -> (N, H, W, Cout) -> NCHW f32.
    out = out.reshape(N, H, W, cout_p)[..., :out_channels]
    return jnp.transpose(out, (0, 3, 1, 2)).astype(jnp.float32)


def _reference_forward(x_nchw, params, rev=False, eps=1e-5):
    """Pure-JAX f32 reference of the module forward (eval mode), NCHW in/out."""
    x = jnp.transpose(x_nchw, (0, 2, 3, 1))
    y = jax.lax.conv_general_dilated(
        x, params["w3"], window_strides=(1, 1), padding="SAME",
        dimension_numbers=("NHWC", "HWIO", "NHWC"))
    inv_std = jax.lax.rsqrt(params["bn_var"] + eps)
    y = (y - params["bn_mean"]) * inv_std * params["bn_gamma"] + params["bn_beta"]
    y = jnp.maximum(y, 0.0)
    w = params["w6"] if not rev else params["w7"]
    b = params["b6"] if not rev else params["b7"]
    y = jnp.einsum("nhwc,co->nhwo", y, w) + b
    return jnp.transpose(y, (0, 3, 1, 2))


def init_params(key, in_channels, out_channels):
    inter = in_channels // 4
    ks = jax.random.split(key, 6)
    return {
        "w3": jax.random.normal(ks[0], (3, 3, in_channels, inter), jnp.float32) * 0.1,
        "bn_gamma": jnp.ones((inter,), jnp.float32) + 0.05 * jax.random.normal(ks[1], (inter,)),
        "bn_beta": 0.05 * jax.random.normal(ks[2], (inter,), jnp.float32),
        "bn_mean": 0.1 * jax.random.normal(ks[3], (inter,), jnp.float32),
        "bn_var": jnp.abs(jax.random.normal(ks[4], (inter,), jnp.float32)) + 0.5,
        "w6": jax.random.normal(ks[5], (inter, out_channels), jnp.float32) * 0.1,
        "b6": 0.01 * jnp.arange(out_channels, dtype=jnp.float32),
        "w7": jax.random.normal(ks[5], (inter, 1), jnp.float32) * 0.1,
        "b7": jnp.array([0.02], jnp.float32),
    }


if __name__ == "__main__":
    key = jax.random.PRNGKey(0)
    kx, kp = jax.random.split(key)

    N, Cin, H, W = 2, 16, 16, 16            # NCHW, as the PyTorch module expects
    out_channels = 8

    x_nchw = jax.random.normal(kx, (N, Cin, H, W), jnp.float32)
    params = init_params(kp, Cin, out_channels)
    prepared = prepare_params(params)        # BN-fold / pad / cast once

    # rev=False path (conv6).
    out = jax.block_until_ready(
        fcn_head_forward(x_nchw, prepared, out_channels=out_channels, rev=False))
    ref = _reference_forward(x_nchw, params, rev=False)
    assert out.shape == (N, out_channels, H, W)
    # bf16 matmul operands + bf16 output storage (f32 accumulation).
    assert jnp.allclose(out, ref, atol=5e-2, rtol=5e-2), \
        float(jnp.max(jnp.abs(out - ref)))

    # rev=True path (conv7, Cout=1) exercises the same padded lane-dense path.
    out_rev = jax.block_until_ready(
        fcn_head_forward(x_nchw, prepared, out_channels=1, rev=True))
    ref_rev = _reference_forward(x_nchw, params, rev=True)
    assert out_rev.shape == (N, 1, H, W)
    assert jnp.allclose(out_rev, ref_rev, atol=5e-2, rtol=5e-2), \
        float(jnp.max(jnp.abs(out_rev - ref_rev)))

    print("KERNEL_OK")
</pallas_src>

<mosaic_0001>
module attributes {stable_mosaic.version = 11 : i64} {
  func.func @_fcn_head_kernel(%arg0: i32, %arg1: i32, %arg2: memref<1x288x16xbf16, #tpu.memory_space<vmem>>, %arg3: memref<3x3x16x128xbf16, #tpu.memory_space<vmem>>, %arg4: memref<1x128xf32, #tpu.memory_space<vmem>>, %arg5: memref<128x128xbf16, #tpu.memory_space<vmem>>, %arg6: memref<1x128xf32, #tpu.memory_space<vmem>>, %arg7: memref<1x128x128xbf16, #tpu.memory_space<vmem>>, %arg8: memref<128x128xf32, #tpu.memory_space<vmem>>) attributes {dimension_semantics = [#tpu.dimension_semantics<parallel>, #tpu.dimension_semantics<parallel>], iteration_bounds = array<i64: 2, 2>, scalar_prefetch = 0 : i64, scratch_operands = 1 : i64, tpu.core_type = #tpu.core_type<tc>, window_params = [{transform_indices = @transform_0, window_bounds = array<i64: 1, 288, 16>}, {pipeline_mode = #tpu.pipeline_mode<synchronous>, transform_indices = @transform_1, window_bounds = array<i64: 3, 3, 16, 128>}, {pipeline_mode = #tpu.pipeline_mode<synchronous>, transform_indices = @transform_2, window_bounds = array<i64: 1, 128>}, {pipeline_mode = #tpu.pipeline_mode<synchronous>, transform_indices = @transform_3, window_bounds = array<i64: 128, 128>}, {pipeline_mode = #tpu.pipeline_mode<synchronous>, transform_indices = @transform_4, window_bounds = array<i64: 1, 128>}, {transform_indices = @transform_5, window_bounds = array<i64: 1, 128, 128>}]} {
    %0 = tpu.iota {dimensions = array<i32: 0>} : vector<128x1xi32>
    %c16_i32 = arith.constant 16 : i32
    %c0_i32 = arith.constant 0 : i32
    %1 = arith.cmpi eq, %c16_i32, %c0_i32 : i32
    %c1_i32 = arith.constant 1 : i32
    %2 = arith.select %1, %c1_i32, %c16_i32 : i32
    %3 = vector.broadcast %2 : i32 to vector<128x1xi32>
    %4 = arith.remsi %0, %3 : vector<128x1xi32>
    %c0_i32_0 = arith.constant 0 : i32
    %5 = vector.broadcast %c0_i32_0 : i32 to vector<128x1xi32>
    %6 = arith.cmpi ne, %4, %5 : vector<128x1xi32>
    %c0_i32_1 = arith.constant 0 : i32
    %7 = vector.broadcast %c0_i32_1 : i32 to vector<128x1xi32>
    %8 = arith.cmpi slt, %4, %7 : vector<128x1xi32>
    %c0_i32_2 = arith.constant 0 : i32
    %9 = arith.cmpi slt, %2, %c0_i32_2 : i32
    %10 = vector.broadcast %9 : i1 to vector<128x1xi1>
    %11 = vector.broadcast %10 : vector<128x1xi1> to vector<128x1xi1>
    %12 = arith.xori %8, %11 : vector<128x1xi1>
    %13 = arith.andi %12, %6 : vector<128x1xi1>
    %14 = vector.broadcast %2 : i32 to vector<128x1xi32>
    %15 = arith.addi %4, %14 : vector<128x1xi32>
    %16 = arith.select %13, %15, %4 : vector<128x1xi1>, vector<128x1xi32>
    %c0_i32_3 = arith.constant 0 : i32
    %17 = vector.broadcast %c0_i32_3 : i32 to vector<128x1xi32>
    %18 = arith.cmpi sgt, %16, %17 : vector<128x1xi32>
    %c15_i32 = arith.constant 15 : i32
    %19 = vector.broadcast %c15_i32 : i32 to vector<128x1xi32>
    %20 = arith.cmpi slt, %16, %19 : vector<128x1xi32>
    %c8_i32 = arith.constant 8 : i32
    %21 = arith.muli %arg1, %c8_i32 : i32
    %c0_i32_4 = arith.constant 0 : i32
    %22 = arith.addi %21, %c0_i32_4 : i32
    %c16_i32_5 = arith.constant 16 : i32
    %23 = arith.muli %22, %c16_i32_5 : i32
    %24 = tpu.assume_multiple %23, 16 : i32
    %c0 = arith.constant 0 : index
    %25 = arith.index_cast %24 : i32 to index
    %c0_6 = arith.constant 0 : index
    %26 = vector.load %arg2[%c0, %25, %c0_6] : memref<1x288x16xbf16, #tpu.memory_space<vmem>>, vector<1x128x16xbf16>
    %27 = vector.shape_cast %26 : vector<1x128x16xbf16> to vector<128x16xbf16>
    %c0_7 = arith.constant 0 : index
    %c1 = arith.constant 1 : index
    %c0_8 = arith.constant 0 : index
    %c0_9 = arith.constant 0 : index
    %28 = vector.load %arg3[%c0_7, %c1, %c0_8, %c0_9] : memref<3x3x16x128xbf16, #tpu.memory_space<vmem>>, vector<1x1x16x128xbf16>
    %29 = vector.shape_cast %28 : vector<1x1x16x128xbf16> to vector<16x128xbf16>
    %cst = arith.constant dense<0.000000e+00> : vector<128x128xf32>
    %30 = tpu.matmul %27, %29, %cst {dimension_numbers = #tpu.dot_dimension_numbers<[1], [0], [0], [1], [0, 0, 1, 1], [], []>} : vector<128x16xbf16>, vector<16x128xbf16>, vector<128x128xf32> -> vector<128x128xf32>
    %c0_10 = arith.constant 0 : index
    %c0_11 = arith.constant 0 : index
    %c0_12 = arith.constant 0 : index
    %c0_13 = arith.constant 0 : index
    %31 = vector.load %arg3[%c0_10, %c0_11, %c0_12, %c0_13] : memref<3x3x16x128xbf16, #tpu.memory_space<vmem>>, vector<1x1x16x128xbf16>
    %32 = vector.shape_cast %31 : vector<1x1x16x128xbf16> to vector<16x128xbf16>
    %cst_14 = arith.constant dense<0.000000e+00> : vector<128x128xf32>
    %33 = tpu.matmul %27, %32, %cst_14 {dimension_numbers = #tpu.dot_dimension_numbers<[1], [0], [0], [1], [0, 0, 1, 1], [], []>} : vector<128x16xbf16>, vector<16x128xbf16>, vector<128x128xf32> -> vector<128x128xf32>
    %c1_i32_15 = arith.constant 1 : i32
    %34 = tpu.dynamic_rotate %33 by %c1_i32_15 dim 0 : vector<128x128xf32>, i32 -> vector<128x128xf32>
    %cst_16 = arith.constant 0.000000e+00 : f32
    %35 = vector.shape_cast %18 : vector<128x1xi1> to vector<128x1xi1>
    %36 = vector.broadcast %35 : vector<128x1xi1> to vector<128x128xi1>
    %37 = vector.broadcast %cst_16 : f32 to vector<128x128xf32>
    %38 = arith.select %36, %34, %37 : vector<128x128xi1>, vector<128x128xf32>
    %39 = arith.addf %30, %38 : vector<128x128xf32>
    %c0_17 = arith.constant 0 : index
    %c2 = arith.constant 2 : index
    %c0_18 = arith.constant 0 : index
    %c0_19 = arith.constant 0 : index
    %40 = vector.load %arg3[%c0_17, %c2, %c0_18, %c0_19] : memref<3x3x16x128xbf16, #tpu.memory_space<vmem>>, vector<1x1x16x128xbf16>
    %41 = vector.shape_cast %40 : vector<1x1x16x128xbf16> to vector<16x128xbf16>
    %cst_20 = arith.constant dense<0.000000e+00> : vector<128x128xf32>
    %42 = tpu.matmul %27, %41, %cst_20 {dimension_numbers = #tpu.dot_dimension_numbers<[1], [0], [0], [1], [0, 0, 1, 1], [], []>} : vector<128x16xbf16>, vector<16x128xbf16>, vector<128x128xf32> -> vector<128x128xf32>
    %c127_i32 = arith.constant 127 : i32
    %43 = tpu.dynamic_rotate %42 by %c127_i32 dim 0 : vector<128x128xf32>, i32 -> vector<128x128xf32>
    %cst_21 = arith.constant 0.000000e+00 : f32
    %44 = vector.shape_cast %20 : vector<128x1xi1> to vector<128x1xi1>
    %45 = vector.broadcast %44 : vector<128x1xi1> to vector<128x128xi1>
    %46 = vector.broadcast %cst_21 : f32 to vector<128x128xf32>
    %47 = arith.select %45, %43, %46 : vector<128x128xi1>, vector<128x128xf32>
    %48 = arith.addf %39, %47 : vector<128x128xf32>
    %c0_22 = arith.constant 0 : index
    %c0_23 = arith.constant 0 : index
    %49 = vector.load %arg8[%c0_22, %c0_23] : memref<128x128xf32, #tpu.memory_space<vmem>>, vector<128x128xf32>
    tpu.vector_store %arg8[%c0_22, %c0_23], %48 {strides = array<i32>} : memref<128x128xf32, #tpu.memory_space<vmem>>, vector<128x128xf32>,
    %c8_i32_24 = arith.constant 8 : i32
    %50 = arith.muli %arg1, %c8_i32_24 : i32
    %c1_i32_25 = arith.constant 1 : i32
    %51 = arith.addi %50, %c1_i32_25 : i32
    %c16_i32_26 = arith.constant 16 : i32
    %52 = arith.muli %51, %c16_i32_26 : i32
    %53 = tpu.assume_multiple %52, 16 : i32
    %c0_27 = arith.constant 0 : index
    %54 = arith.index_cast %53 : i32 to index
    %c0_28 = arith.constant 0 : index
    %55 = vector.load %arg2[%c0_27, %54, %c0_28] : memref<1x288x16xbf16, #tpu.memory_space<vmem>>, vector<1x128x16xbf16>
    %56 = vector.shape_cast %55 : vector<1x128x16xbf16> to vector<128x16xbf16>
    %c1_29 = arith.constant 1 : index
    %c1_30 = arith.constant 1 : index
    %c0_31 = arith.constant 0 : index
    %c0_32 = arith.constant 0 : index
    %57 = vector.load %arg3[%c1_29, %c1_30, %c0_31, %c0_32] : memref<3x3x16x128xbf16, #tpu.memory_space<vmem>>, vector<1x1x16x128xbf16>
    %58 = vector.shape_cast %57 : vector<1x1x16x128xbf16> to vector<16x128xbf16>
    %cst_33 = arith.constant dense<0.000000e+00> : vector<128x128xf32>
    %59 = tpu.matmul %56, %58, %cst_33 {dimension_numbers = #tpu.dot_dimension_numbers<[1], [0], [0], [1], [0, 0, 1, 1], [], []>} : vector<128x16xbf16>, vector<16x128xbf16>, vector<128x128xf32> -> vector<128x128xf32>
    %c1_34 = arith.constant 1 : index
    %c0_35 = arith.constant 0 : index
    %c0_36 = arith.constant 0 : index
    %c0_37 = arith.constant 0 : index
    %60 = vector.load %arg3[%c1_34, %c0_35, %c0_36, %c0_37] : memref<3x3x16x128xbf16, #tpu.memory_space<vmem>>, vector<1x1x16x128xbf16>
    %61 = vector.shape_cast %60 : vector<1x1x16x128xbf16> to vector<16x128xbf16>
    %cst_38 = arith.constant dense<0.000000e+00> : vector<128x128xf32>
    %62 = tpu.matmul %56, %61, %cst_38 {dimension_numbers = #tpu.dot_dimension_numbers<[1], [0], [0], [1], [0, 0, 1, 1], [], []>} : vector<128x16xbf16>, vector<16x128xbf16>, vector<128x128xf32> -> vector<128x128xf32>
    %c1_i32_39 = arith.constant 1 : i32
    %63 = tpu.dynamic_rotate %62 by %c1_i32_39 dim 0 : vector<128x128xf32>, i32 -> vector<128x128xf32>
    %cst_40 = arith.constant 0.000000e+00 : f32
    %64 = vector.shape_cast %18 : vector<128x1xi1> to vector<128x1xi1>
    %65 = vector.broadcast %64 : vector<128x1xi1> to vector<128x128xi1>
    %66 = vector.broadcast %cst_40 : f32 to vector<128x128xf32>
    %67 = arith.select %65, %63, %66 : vector<128x128xi1>, vector<128x128xf32>
    %68 = arith.addf %59, %67 : vector<128x128xf32>
    %c1_41 = arith.constant 1 : index
    %c2_42 = arith.constant 2 : index
    %c0_43 = arith.constant 0 : index
    %c0_44 = arith.constant 0 : index
    %69 = vector.load %arg3[%c1_41, %c2_42, %c0_43, %c0_44] : memref<3x3x16x128xbf16, #tpu.memory_space<vmem>>, vector<1x1x16x128xbf16>
    %70 = vector.shape_cast %69 : vector<1x1x16x128xbf16> to vector<16x128xbf16>
    %cst_45 = arith.constant dense<0.000000e+00> : vector<128x128xf32>
    %71 = tpu.matmul %56, %70, %cst_45 {dimension_numbers = #tpu.dot_dimension_numbers<[1], [0], [0], [1], [0, 0, 1, 1], [], []>} : vector<128x16xbf16>, vector<16x128xbf16>, vector<128x128xf32> -> vector<128x128xf32>
    %c127_i32_46 = arith.constant 127 : i32
    %72 = tpu.dynamic_rotate %71 by %c127_i32_46 dim 0 : vector<128x128xf32>, i32 -> vector<128x128xf32>
    %cst_47 = arith.constant 0.000000e+00 : f32
    %73 = vector.shape_cast %20 : vector<128x1xi1> to vector<128x1xi1>
    %74 = vector.broadcast %73 : vector<128x1xi1> to vector<128x128xi1>
    %75 = vector.broadcast %cst_47 : f32 to vector<128x128xf32>
    %76 = arith.select %74, %72, %75 : vector<128x128xi1>, vector<128x128xf32>
    %77 = arith.addf %68, %76 : vector<128x128xf32>
    %c0_48 = arith.constant 0 : index
    %c0_49 = arith.constant 0 : index
    %78 = vector.load %arg8[%c0_48, %c0_49] : memref<128x128xf32, #tpu.memory_space<vmem>>, vector<128x128xf32>
    %79 = arith.addf %78, %77 : vector<128x128xf32>
    %c0_50 = arith.constant 0 : index
    %c0_51 = arith.constant 0 : index
    %80 = vector.load %arg8[%c0_50, %c0_51] : memref<128x128xf32, #tpu.memory_space<vmem>>, vector<128x128xf32>
    tpu.vector_store %arg8[%c0_50, %c0_51], %79 {strides = array<i32>} : memref<128x128xf32, #tpu.memory_space<vmem>>, vector<128x128xf32>,
    %c8_i32_52 = arith.constant 8 : i32
    %81 = arith.muli %arg1, %c8_i32_52 : i32
    %c2_i32 = arith.constant 2 : i32
    %82 = arith.addi %81, %c2_i32 : i32
    %c16_i32_53 = arith.constant 16 : i32
    %83 = arith.muli %82, %c16_i32_53 : i32
    %84 = tpu.assume_multiple %83, 16 : i32
    %c0_54 = arith.constant 0 : index
    %85 = arith.index_cast %84 : i32 to index
    %c0_55 = arith.constant 0 : index
    %86 = vector.load %arg2[%c0_54, %85, %c0_55] : memref<1x288x16xbf16, #tpu.memory_space<vmem>>, vector<1x128x16xbf16>
    %87 = vector.shape_cast %86 : vector<1x128x16xbf16> to vector<128x16xbf16>
    %c2_56 = arith.constant 2 : index
    %c1_57 = arith.constant 1 : index
    %c0_58 = arith.constant 0 : index
    %c0_59 = arith.constant 0 : index
    %88 = vector.load %arg3[%c2_56, %c1_57, %c0_58, %c0_59] : memref<3x3x16x128xbf16, #tpu.memory_space<vmem>>, vector<1x1x16x128xbf16>
    %89 = vector.shape_cast %88 : vector<1x1x16x128xbf16> to vector<16x128xbf16>
    %cst_60 = arith.constant dense<0.000000e+00> : vector<128x128xf32>
    %90 = tpu.matmul %87, %89, %cst_60 {dimension_numbers = #tpu.dot_dimension_numbers<[1], [0], [0], [1], [0, 0, 1, 1], [], []>} : vector<128x16xbf16>, vector<16x128xbf16>, vector<128x128xf32> -> vector<128x128xf32>
    %c2_61 = arith.constant 2 : index
    %c0_62 = arith.constant 0 : index
    %c0_63 = arith.constant 0 : index
    %c0_64 = arith.constant 0 : index
    %91 = vector.load %arg3[%c2_61, %c0_62, %c0_63, %c0_64] : memref<3x3x16x128xbf16, #tpu.memory_space<vmem>>, vector<1x1x16x128xbf16>
    %92 = vector.shape_cast %91 : vector<1x1x16x128xbf16> to vector<16x128xbf16>
    %cst_65 = arith.constant dense<0.000000e+00> : vector<128x128xf32>
    %93 = tpu.matmul %87, %92, %cst_65 {dimension_numbers = #tpu.dot_dimension_numbers<[1], [0], [0], [1], [0, 0, 1, 1], [], []>} : vector<128x16xbf16>, vector<16x128xbf16>, vector<128x128xf32> -> vector<128x128xf32>
    %c1_i32_66 = arith.constant 1 : i32
    %94 = tpu.dynamic_rotate %93 by %c1_i32_66 dim 0 : vector<128x128xf32>, i32 -> vector<128x128xf32>
    %cst_67 = arith.constant 0.000000e+00 : f32
    %95 = vector.shape_cast %18 : vector<128x1xi1> to vector<128x1xi1>
    %96 = vector.broadcast %95 : vector<128x1xi1> to vector<128x128xi1>
    %97 = vector.broadcast %cst_67 : f32 to vector<128x128xf32>
    %98 = arith.select %96, %94, %97 : vector<128x128xi1>, vector<128x128xf32>
    %99 = arith.addf %90, %98 : vector<128x128xf32>
    %c2_68 = arith.constant 2 : index
    %c2_69 = arith.constant 2 : index
    %c0_70 = arith.constant 0 : index
    %c0_71 = arith.constant 0 : index
    %100 = vector.load %arg3[%c2_68, %c2_69, %c0_70, %c0_71] : memref<3x3x16x128xbf16, #tpu.memory_space<vmem>>, vector<1x1x16x128xbf16>
    %101 = vector.shape_cast %100 : vector<1x1x16x128xbf16> to vector<16x128xbf16>
    %cst_72 = arith.constant dense<0.000000e+00> : vector<128x128xf32>
    %102 = tpu.matmul %87, %101, %cst_72 {dimension_numbers = #tpu.dot_dimension_numbers<[1], [0], [0], [1], [0, 0, 1, 1], [], []>} : vector<128x16xbf16>, vector<16x128xbf16>, vector<128x128xf32> -> vector<128x128xf32>
    %c127_i32_73 = arith.constant 127 : i32
    %103 = tpu.dynamic_rotate %102 by %c127_i32_73 dim 0 : vector<128x128xf32>, i32 -> vector<128x128xf32>
    %cst_74 = arith.constant 0.000000e+00 : f32
    %104 = vector.shape_cast %20 : vector<128x1xi1> to vector<128x1xi1>
    %105 = vector.broadcast %104 : vector<128x1xi1> to vector<128x128xi1>
    %106 = vector.broadcast %cst_74 : f32 to vector<128x128xf32>
    %107 = arith.select %105, %103, %106 : vector<128x128xi1>, vector<128x128xf32>
    %108 = arith.addf %99, %107 : vector<128x128xf32>
    %c0_75 = arith.constant 0 : index
    %c0_76 = arith.constant 0 : index
    %109 = vector.load %arg8[%c0_75, %c0_76] : memref<128x128xf32, #tpu.memory_space<vmem>>, vector<128x128xf32>
    %110 = arith.addf %109, %108 : vector<128x128xf32>
    %c0_77 = arith.constant 0 : index
    %c0_78 = arith.constant 0 : index
    %111 = vector.load %arg8[%c0_77, %c0_78] : memref<128x128xf32, #tpu.memory_space<vmem>>, vector<128x128xf32>
    tpu.vector_store %arg8[%c0_77, %c0_78], %110 {strides = array<i32>} : memref<128x128xf32, #tpu.memory_space<vmem>>, vector<128x128xf32>,
    %c0_79 = arith.constant 0 : index
    %c0_80 = arith.constant 0 : index
    %112 = vector.load %arg8[%c0_79, %c0_80] : memref<128x128xf32, #tpu.memory_space<vmem>>, vector<128x128xf32>
    %c0_81 = arith.constant 0 : index
    %c0_82 = arith.constant 0 : index
    %113 = vector.load %arg4[%c0_81, %c0_82] : memref<1x128xf32, #tpu.memory_space<vmem>>, vector<1x128xf32>
    %114 = vector.broadcast %113 : vector<1x128xf32> to vector<128x128xf32>
    %115 = arith.addf %112, %114 : vector<128x128xf32>
    %cst_83 = arith.constant 0.000000e+00 : f32
    %116 = vector.broadcast %cst_83 : f32 to vector<128x128xf32>
    %117 = arith.maximumf %115, %116 : vector<128x128xf32>
    %118 = arith.truncf %117 : vector<128x128xf32> to vector<128x128xbf16>
    %c0_84 = arith.constant 0 : index
    %c0_85 = arith.constant 0 : index
    %119 = vector.load %arg5[%c0_84, %c0_85] : memref<128x128xbf16, #tpu.memory_space<vmem>>, vector<128x128xbf16>
    %cst_86 = arith.constant dense<0.000000e+00> : vector<128x128xf32>
    %120 = tpu.matmul %118, %119, %cst_86 {dimension_numbers = #tpu.dot_dimension_numbers<[1], [0], [0], [1], [0, 0, 1, 1], [], []>} : vector<128x128xbf16>, vector<128x128xbf16>, vector<128x128xf32> -> vector<128x128xf32>
    %c0_87 = arith.constant 0 : index
    %c0_88 = arith.constant 0 : index
    %121 = vector.load %arg6[%c0_87, %c0_88] : memref<1x128xf32, #tpu.memory_space<vmem>>, vector<1x128xf32>
    %122 = vector.broadcast %121 : vector<1x128xf32> to vector<128x128xf32>
    %123 = arith.addf %120, %122 : vector<128x128xf32>
    %124 = arith.truncf %123 : vector<128x128xf32> to vector<128x128xbf16>
    %c0_89 = arith.constant 0 : index
    %c0_90 = arith.constant 0 : index
    %c0_91 = arith.constant 0 : index
    %125 = vector.load %arg7[%c0_89, %c0_90, %c0_91] : memref<1x128x128xbf16, #tpu.memory_space<vmem>>, vector<1x128x128xbf16>
    %126 = vector.shape_cast %125 : vector<1x128x128xbf16> to vector<128x128xbf16>
    %127 = vector.shape_cast %124 : vector<128x128xbf16> to vector<1x128x128xbf16>
    tpu.vector_store %arg7[%c0_89, %c0_90, %c0_91], %127 {strides = array<i32>} : memref<1x128x128xbf16, #tpu.memory_space<vmem>>, vector<1x128x128xbf16>,
    return
  }
  func.func @transform_0(%arg0: i32, %arg1: i32) -> (i32, i32, i32) {
    %c0_i32 = arith.constant 0 : i32
    %c0_i32_0 = arith.constant 0 : i32
    %c0_i32_1 = arith.constant 0 : i32
    return %arg0, %c0_i32, %c0_i32_0 : i32, i32, i32
  }
  func.func @transform_1(%arg0: i32, %arg1: i32) -> (i32, i32, i32, i32) {
    %c0_i32 = arith.constant 0 : i32
    %c0_i32_0 = arith.constant 0 : i32
    %c0_i32_1 = arith.constant 0 : i32
    %c0_i32_2 = arith.constant 0 : i32
    %c0_i32_3 = arith.constant 0 : i32
    return %c0_i32, %c0_i32_0, %c0_i32_1, %c0_i32_2 : i32, i32, i32, i32
  }
  func.func @transform_2(%arg0: i32, %arg1: i32) -> (i32, i32) {
    %c0_i32 = arith.constant 0 : i32
    %c0_i32_0 = arith.constant 0 : i32
    %c0_i32_1 = arith.constant 0 : i32
    return %c0_i32, %c0_i32_0 : i32, i32
  }
  func.func @transform_3(%arg0: i32, %arg1: i32) -> (i32, i32) {
    %c0_i32 = arith.constant 0 : i32
    %c0_i32_0 = arith.constant 0 : i32
    %c0_i32_1 = arith.constant 0 : i32
    return %c0_i32, %c0_i32_0 : i32, i32
  }
  func.func @transform_4(%arg0: i32, %arg1: i32) -> (i32, i32) {
    %c0_i32 = arith.constant 0 : i32
    %c0_i32_0 = arith.constant 0 : i32
    %c0_i32_1 = arith.constant 0 : i32
    return %c0_i32, %c0_i32_0 : i32, i32
  }
  func.func @transform_5(%arg0: i32, %arg1: i32) -> (i32, i32, i32) {
    %c0_i32 = arith.constant 0 : i32
    %c0_i32_0 = arith.constant 0 : i32
    return %arg0, %arg1, %c0_i32 : i32, i32, i32
  }
}

</mosaic_0001>

<llo_original>
// kernel: fcn_head_forward.1
$region0: #{fcn_head_forward.1}
  #allocation0 [shape = 'u32[]', space=smem, size = 0x4, offset = 0x4, fixed_abs, tag = 'smem constant byte address 0x4 - core index']
  #allocation1 [shape = 'u32[144,128]{1,0:T(1,128)}', space=vmem, size = 0x12000, scoped, tag = 'internal scratch']
  #allocation2 [shape = 'f32[128,128]{1,0:T(8,128)}', space=vmem, size = 0x10000, scoped, tag = 'scratch operand']
  %s0 = inlined_call_operand.vmem [shape: bf16[2,288,16], index: 0, kind: input, shape index: {}]
  %s1 = inlined_call_operand.vmem [shape: bf16[3,3,16,128], index: 1, kind: input, shape index: {}]
  %s2 = inlined_call_operand.vmem [shape: f32[1,128], index: 2, kind: input, shape index: {}]
  %s3 = inlined_call_operand.vmem [shape: bf16[128,128], index: 3, kind: input, shape index: {}]
  %s4 = inlined_call_operand.vmem [shape: f32[1,128], index: 4, kind: input, shape index: {}]
  %s5 = inlined_call_operand.vmem [shape: bf16[2,256,128], index: 5, kind: output, shape index: {}]
  %s6 = sld [smem:[#allocation0]]
  $region53: #{fcn_head_forward.1} parent=0
    _
  %s8 = ssub.s32 1, %s6
  %s9 = scalar_select 0, %s8, %s6
  loop: start=0, step=1, limit=6
  $region2: #{fcn_head_forward.1} parent=0 // loop_pre_header
    _
  $region3: #{fcn_head_forward.1} parent=0 // loop_header
    %s11 = sphi 0, %s15
    %p12 = scmp.ge.s32.totalorder %s11, 6
    %s18 = sphi 0, %s30
    %s19 = sphi 0, %s26
    %s20 = sphi 0, %s18
    %s21 = sphi 0, %s19
    %s22 = sphi 0, %s20
    %s23 = sphi 0, %s21
    %s33 = sphi 0, %s35
    %s36 = sphi 0, %s33
    %s37 = sphi 0, %s36
    %s53 = sphi 0, %s37
    %s57 = sphi 0, %s57
    %s59 = sphi 0, %s57
    %s60 = sphi 0, %s59
    %s74 = sphi 0, %s60
    %s78 = sphi 0, %s78
    %s80 = sphi 0, %s78
    %s81 = sphi 0, %s80
    %s95 = sphi 0, %s81
    %s99 = sphi 0, %s99
    %s101 = sphi 0, %s99
    %s102 = sphi 0, %s101
    %s116 = sphi 0, %s102
    %s120 = sphi 0, %s120
    %s122 = sphi 0, %s120
    %s123 = sphi 0, %s122
    %s137 = sphi 0, %s123
    %s145 = sphi 0, %s147
    %s148 = sphi 0, %s145
    %s149 = sphi 0, %s148
    %s165 = sphi 0, %s149
  $region4: #{fcn_head_forward.1} parent=0 // loop_header_branch
    %14 = sbr.rel (%p12) target = $region8
  $region5: #{fcn_head_forward.1} parent=0 // loop_body
    %s16 = ssub.s32 %s11, 1
    %s17 = ssub.s32 %s11, 2
    %s24 = sadd.s32 1, %s19
    %p25 = scmp.ge.s32.totalorder %s24, 2
    %s26 = scalar_select %p25, 0, %s24
    %s27 = sadd.s32 1, %s18
    %s28 = scalar_select %p25, %s27, %s18
    %p29 = scmp.ge.s32.totalorder %s28, 2
    %s30 = scalar_select %p29, 0, %s28
    %s31 = ssub.s32 %s18, %s30
    %p32 = scmp.eq.s32.totalorder %s31, 0
    %s34 = sadd.s32 %s33, 1
    %s35 = scalar_select %p32, %s33, %s34
    %p38 = pneg %p32
    %p39 = scmp.eq.s32.totalorder %s11, 3
    %p40 = por %p38, %p39
    %p41 = scmp.ne.s32.totalorder %s33, %s36
    %p42 = scmp.eq.s32.totalorder %s11, 0
    %p43 = por %p41, %p42
    %p44 = scmp.ne.s32.totalorder %s33, %s36
    %p45 = scmp.eq.s32.totalorder %s16, 3
    %p46 = por %p44, %p45
    %p47 = scmp.ne.s32.totalorder %s36, %s37
    %p48 = scmp.eq.s32.totalorder %s16, 0
    %p49 = por %p47, %p48
    %p50 = scmp.ne.s32.totalorder %s36, %s37
    %p51 = scmp.eq.s32.totalorder %s17, 3
    %p52 = por %p50, %p51
    %p54 = scmp.ne.s32.totalorder %s37, %s53
    %p55 = scmp.eq.s32.totalorder %s17, 0
    %p56 = por %p54, %p55
    %s58 = sadd.s32 %s57, 1
    %p61 = scmp.eq.s32.totalorder %s11, 3
    %p62 = scmp.ne.s32.totalorder %s57, %s59
    %p63 = scmp.eq.s32.totalorder %s11, 0
    %p64 = por %p62, %p63
    %p65 = scmp.ne.s32.totalorder %s57, %s59
    %p66 = scmp.eq.s32.totalorder %s16, 3
    %p67 = por %p65, %p66
    %p68 = scmp.ne.s32.totalorder %s59, %s60
    %p69 = scmp.eq.s32.totalorder %s16, 0
    %p70 = por %p68, %p69
    %p71 = scmp.ne.s32.totalorder %s59, %s60
    %p72 = scmp.eq.s32.totalorder %s17, 3
    %p73 = por %p71, %p72
    %p75 = scmp.ne.s32.totalorder %s60, %s74
    %p76 = scmp.eq.s32.totalorder %s17, 0
    %p77 = por %p75, %p76
    %s79 = sadd.s32 %s78, 1
    %p82 = scmp.eq.s32.totalorder %s11, 3
    %p83 = scmp.ne.s32.totalorder %s78, %s80
    %p84 = scmp.eq.s32.totalorder %s11, 0
    %p85 = por %p83, %p84
    %p86 = scmp.ne.s32.totalorder %s78, %s80
    %p87 = scmp.eq.s32.totalorder %s16, 3
    %p88 = por %p86, %p87
    %p89 = scmp.ne.s32.totalorder %s80, %s81
    %p90 = scmp.eq.s32.totalorder %s16, 0
    %p91 = por %p89, %p90
    %p92 = scmp.ne.s32.totalorder %s80, %s81
    %p93 = scmp.eq.s32.totalorder %s17, 3
    %p94 = por %p92, %p93
    %p96 = scmp.ne.s32.totalorder %s81, %s95
    %p97 = scmp.eq.s32.totalorder %s17, 0
    %p98 = por %p96, %p97
    %s100 = sadd.s32 %s99, 1
    %p103 = scmp.eq.s32.totalorder %s11, 3
    %p104 = scmp.ne.s32.totalorder %s99, %s101
    %p105 = scmp.eq.s32.totalorder %s11, 0
    %p106 = por %p104, %p105
    %p107 = scmp.ne.s32.totalorder %s99, %s101
    %p108 = scmp.eq.s32.totalorder %s16, 3
    %p109 = por %p107, %p108
    %p110 = scmp.ne.s32.totalorder %s101, %s102
    %p111 = scmp.eq.s32.totalorder %s16, 0
    %p112 = por %p110, %p111
    %p113 = scmp.ne.s32.totalorder %s101, %s102
    %p114 = scmp.eq.s32.totalorder %s17, 3
    %p115 = por %p113, %p114
    %p117 = scmp.ne.s32.totalorder %s102, %s116
    %p118 = scmp.eq.s32.totalorder %s17, 0
    %p119 = por %p117, %p118
    %s121 = sadd.s32 %s120, 1
    %p124 = scmp.eq.s32.totalorder %s11, 3
    %p125 = scmp.ne.s32.totalorder %s120, %s122
    %p126 = scmp.eq.s32.totalorder %s11, 0
    %p127 = por %p125, %p126
    %p128 = scmp.ne.s32.totalorder %s120, %s122
    %p129 = scmp.eq.s32.totalorder %s16, 3
    %p130 = por %p128, %p129
    %p131 = scmp.ne.s32.totalorder %s122, %s123
    %p132 = scmp.eq.s32.totalorder %s16, 0
    %p133 = por %p131, %p132
    %p134 = scmp.ne.s32.totalorder %s122, %s123
    %p135 = scmp.eq.s32.totalorder %s17, 3
    %p136 = por %p134, %p135
    %p138 = scmp.ne.s32.totalorder %s123, %s137
    %p139 = scmp.eq.s32.totalorder %s17, 0
    %p140 = por %p138, %p139
    %s141 = ssub.s32 %s18, %s30
    %s142 = ssub.s32 %s19, %s26
    %s143 = sor.u32 %s141, %s142
    %p144 = scmp.eq.s32.totalorder %s143, 0
    %s146 = sadd.s32 %s145, 1
    %s147 = scalar_select %p144, %s145, %s146
    %p150 = pneg %p144
    %p151 = scmp.eq.s32.totalorder %s11, 3
    %p152 = por %p150, %p151
    %p153 = scmp.ne.s32.totalorder %s145, %s148
    %p154 = scmp.eq.s32.totalorder %s11, 0
    %p155 = por %p153, %p154
    %p156 = scmp.ne.s32.totalorder %s145, %s148
    %p157 = scmp.eq.s32.totalorder %s16, 3
    %p158 = por %p156, %p157
    %p159 = scmp.ne.s32.totalorder %s148, %s149
    %p160 = scmp.eq.s32.totalorder %s16, 0
    %p161 = por %p159, %p160
    %p162 = scmp.ne.s32.totalorder %s148, %s149
    %p163 = scmp.eq.s32.totalorder %s17, 3
    %p164 = por %p162, %p163
    %p166 = scmp.ne.s32.totalorder %s149, %s165
    %p167 = scmp.eq.s32.totalorder %s17, 0
    %p168 = por %p166, %p167
    %p169 = scmp.le.s32.totalorder 1, %s11
    %p170 = scmp.lt.s32.totalorder %s11, 5
    %p171 = pnand %p169, %p170
    %p172 = pneg %p171
    // Predicated region
    $region9: #{fcn_head_forward.1} parent=5 // pred_check
      _
    $region10: #{fcn_head_forward.1} parent=5 // pred_check_branch
      %174 = sbr.rel (%p171) target = $region12
    $region11: #{fcn_head_forward.1} parent=5 // pred_region
      %s175 = ssub.s32 %s11, 1
      // Predicated region
      $region13: #{fcn_head_forward.1} parent=11 // pred_check
        %p176 = pneg %p70
      $region14: #{fcn_head_forward.1} parent=11 // pred_check_branch
        %178 = sbr.rel (%p176) target = $region16
      $region15: #{fcn_head_forward.1} parent=11 // pred_region
        _
      $region16: #{fcn_head_forward.1} parent=11 // pred_fallthru
        _
      // Predicated region
      $region17: #{fcn_head_forward.1} parent=11 // pred_check
        %p179 = pneg %p91
      $region18: #{fcn_head_forward.1} parent=11 // pred_check_branch
        %181 = sbr.rel (%p179) target = $region20
      $region19: #{fcn_head_forward.1} parent=11 // pred_region
        _
      $region20: #{fcn_head_forward.1} parent=11 // pred_fallthru
        _
      // Predicated region
      $region21: #{fcn_head_forward.1} parent=11 // pred_check
        %p182 = pneg %p112
      $region22: #{fcn_head_forward.1} parent=11 // pred_check_branch
        %184 = sbr.rel (%p182) target = $region24
      $region23: #{fcn_head_forward.1} parent=11 // pred_region
        _
      $region24: #{fcn_head_forward.1} parent=11 // pred_fallthru
        _
      // Predicated region
      $region25: #{fcn_head_forward.1} parent=11 // pred_check
        %p185 = pneg %p133
      $region26: #{fcn_head_forward.1} parent=11 // pred_check_branch
        %187 = sbr.rel (%p185) target = $region28
      $region27: #{fcn_head_forward.1} parent=11 // pred_region
        _
      $region28: #{fcn_head_forward.1} parent=11 // pred_fallthru
        _
    $region12: #{fcn_head_forward.1} parent=5 // pred_fallthru
      _
    %p188 = scmp.lt.s32.totalorder %s11, 4
    // Predicated region
    $region29: #{fcn_head_forward.1} parent=5 // pred_check
      %p189 = pneg %p188
    $region30: #{fcn_head_forward.1} parent=5 // pred_check_branch
      %191 = sbr.rel (%p189) target = $region32
    $region31: #{fcn_head_forward.1} parent=5 // pred_region
      // Predicated region
      $region33: #{fcn_head_forward.1} parent=31 // pred_check
        %p192 = pneg %p43
      $region34: #{fcn_head_forward.1} parent=31 // pred_check_branch
        %194 = sbr.rel (%p192) target = $region36
      $region35: #{fcn_head_forward.1} parent=31 // pred_region
        %p195 = scmp.lt.s32.totalorder %s18, 1
        %s196 = scalar_select %p195, %s18, 1
        %s197 = smul.addr %s196, 36
        %s198 = smul.addr %s197, 4
        %s199 = scalar_lea.vmem %s0, %s198
      $region36: #{fcn_head_forward.1} parent=31 // pred_fallthru
        _
    $region32: #{fcn_head_forward.1} parent=5 // pred_fallthru
      _
    %p200 = scmp.le.s32.totalorder 1, %s11
    %p201 = scmp.lt.s32.totalorder %s11, 5
    %p202 = pnand %p200, %p201
    %p203 = pneg %p202
    // Predicated region
    $region37: #{fcn_head_forward.1} parent=5 // pred_check
      _
    $region38: #{fcn_head_forward.1} parent=5 // pred_check_branch
      %205 = sbr.rel (%p202) target = $region40
    $region39: #{fcn_head_forward.1} parent=5 // pred_region
      %s206 = ssub.s32 %s11, 1
      %p207 = scmp.lt.s32.totalorder %s20, 1
      %s208 = scalar_select %p207, %s20, 1
      %s209 = smul.addr %s208, 36
      %s210 = smul.addr %s209, 4
      %s211 = scalar_lea.vmem %s0, %s210
      %p212 = pneg %p49
      %p213 = pneg %p46
      %p214 = pneg %p70
      %p215 = pneg %p67
      %p216 = pneg %p91
      %p217 = pneg %p88
      %p218 = pneg %p112
      %p219 = pneg %p109
      %p220 = pneg %p133
      %p221 = pneg %p130
      %p222 = pneg %p161
      %p223 = pneg %p158
      %s224 = smul.u32 16, %s21
      %p225 = scmp.lt.s32.totalorder %s20, 1
      %s226 = scalar_select %p225, %s20, 1
      %p227 = scmp.lt.s32.totalorder %s224, 31
      %s228 = scalar_select %p227, %s224, 31
      %s229 = smul.addr %s226, 32
      %s230 = sadd.s32 %s228, %s229
      %s231 = smul.addr %s230, 4
      %s232 = scalar_lea.vmem %s5, %s231
      %p233 = scmp.lt.s32.totalorder %s20, 1
      %s234 = scalar_select %p233, %s20, 1
      %s235 = smul.addr %s234, 36
      %s236 = smul.addr %s235, 4
      %s237 = scalar_lea.vmem %s0, %s236
      %s238 = smul.u32 16, %s21
      %p239 = scmp.lt.s32.totalorder %s20, 1
      %s240 = scalar_select %p239, %s20, 1
      %p241 = scmp.lt.s32.totalorder %s238, 31
      %s242 = scalar_select %p241, %s238, 31
      %s243 = smul.addr %s240, 32
      %s244 = sadd.s32 %s242, %s243
      %s245 = smul.addr %s244, 4
      %s246 = scalar_lea.vmem %s5, %s245
      %s247 = smul.u32 16, %s21
      %v249 = vlaneseq
      %v250 = vshrl.u32 %v249, 7
      %v251 = vadd.s32 %v250, 8
      %v252 = vadd.s32 %v250, 16
      %v253 = vadd.s32 %v250, 24
      %v254 = vadd.s32 %v250, 32
      %v255 = vadd.s32 %v250, 40
      %v256 = vadd.s32 %v250, 48
      %v257 = vadd.s32 %v250, 56
      %v258 = vadd.s32 %v250, 64
      %v259 = vadd.s32 %v250, 72
      %v260 = vadd.s32 %v250, 80
      %v261 = vadd.s32 %v250, 88
      %v262 = vadd.s32 %v250, 96
      %v263 = vadd.s32 %v250, 104
      %v264 = vadd.s32 %v250, 112
      %v265 = vadd.s32 %v250, 120
      %vm266 = vcmp.lt.s32.totalorder %v250, 0
      %v267 = vsub.s32 0, %v250
      %v268 = vsel %vm266, %v267, %v250
      %v269 = vshrl.u32 %v268, 4
      %v270 = vand.u32 %v268, 15
      %v271 = vsub.s32 0, %v270
      %v272 = vsel %vm266, %v271, %v270
      %vm273 = vcmp.lt.s32.totalorder %v251, 0
      %v274 = vsub.s32 0, %v251
      %v275 = vsel %vm273, %v274, %v251
      %v276 = vshrl.u32 %v275, 4
      %v277 = vand.u32 %v275, 15
      %v278 = vsub.s32 0, %v277
      %v279 = vsel %vm273, %v278, %v277
      %vm280 = vcmp.lt.s32.totalorder %v252, 0
      %v281 = vsub.s32 0, %v252
      %v282 = vsel %vm280, %v281, %v252
      %v283 = vshrl.u32 %v282, 4
      %v284 = vand.u32 %v282, 15
      %v285 = vsub.s32 0, %v284
      %v286 = vsel %vm280, %v285, %v284
      %vm287 = vcmp.lt.s32.totalorder %v253, 0
      %v288 = vsub.s32 0, %v253
      %v289 = vsel %vm287, %v288, %v253
      %v290 = vshrl.u32 %v289, 4
      %v291 = vand.u32 %v289, 15
      %v292 = vsub.s32 0, %v291
      %v293 = vsel %vm287, %v292, %v291
      %vm294 = vcmp.lt.s32.totalorder %v254, 0
      %v295 = vsub.s32 0, %v254
      %v296 = vsel %vm294, %v295, %v254
      %v297 = vshrl.u32 %v296, 4
      %v298 = vand.u32 %v296, 15
      %v299 = vsub.s32 0, %v298
      %v300 = vsel %vm294, %v299, %v298
      %vm301 = vcmp.lt.s32.totalorder %v255, 0
      %v302 = vsub.s32 0, %v255
      %v303 = vsel %vm301, %v302, %v255
      %v304 = vshrl.u32 %v303, 4
      %v305 = vand.u32 %v303, 15
      %v306 = vsub.s32 0, %v305
      %v307 = vsel %vm301, %v306, %v305
      %vm308 = vcmp.lt.s32.totalorder %v256, 0
      %v309 = vsub.s32 0, %v256
      %v310 = vsel %vm308, %v309, %v256
      %v311 = vshrl.u32 %v310, 4
      %v312 = vand.u32 %v310, 15
      %v313 = vsub.s32 0, %v312
      %v314 = vsel %vm308, %v313, %v312
      %vm315 = vcmp.lt.s32.totalorder %v257, 0
      %v316 = vsub.s32 0, %v257
      %v317 = vsel %vm315, %v316, %v257
      %v318 = vshrl.u32 %v317, 4
      %v319 = vand.u32 %v317, 15
      %v320 = vsub.s32 0, %v319
      %v321 = vsel %vm315, %v320, %v319
      %vm322 = vcmp.lt.s32.totalorder %v258, 0
      %v323 = vsub.s32 0, %v258
      %v324 = vsel %vm322, %v323, %v258
      %v325 = vshrl.u32 %v324, 4
      %v326 = vand.u32 %v324, 15
      %v327 = vsub.s32 0, %v326
      %v328 = vsel %vm322, %v327, %v326
      %vm329 = vcmp.lt.s32.totalorder %v259, 0
      %v330 = vsub.s32 0, %v259
      %v331 = vsel %vm329, %v330, %v259
      %v332 = vshrl.u32 %v331, 4
      %v333 = vand.u32 %v331, 15
      %v334 = vsub.s32 0, %v333
      %v335 = vsel %vm329, %v334, %v333
      %vm336 = vcmp.lt.s32.totalorder %v260, 0
      %v337 = vsub.s32 0, %v260
      %v338 = vsel %vm336, %v337, %v260
      %v339 = vshrl.u32 %v338, 4
      %v340 = vand.u32 %v338, 15
      %v341 = vsub.s32 0, %v340
      %v342 = vsel %vm336, %v341, %v340
      %vm343 = vcmp.lt.s32.totalorder %v261, 0
      %v344 = vsub.s32 0, %v261
      %v345 = vsel %vm343, %v344, %v261
      %v346 = vshrl.u32 %v345, 4
      %v347 = vand.u32 %v345, 15
      %v348 = vsub.s32 0, %v347
      %v349 = vsel %vm343, %v348, %v347
      %vm350 = vcmp.lt.s32.totalorder %v262, 0
      %v351 = vsub.s32 0, %v262
      %v352 = vsel %vm350, %v351, %v262
      %v353 = vshrl.u32 %v352, 4
      %v354 = vand.u32 %v352, 15
      %v355 = vsub.s32 0, %v354
      %v356 = vsel %vm350, %v355, %v354
      %vm357 = vcmp.lt.s32.totalorder %v263, 0
      %v358 = vsub.s32 0, %v263
      %v359 = vsel %vm357, %v358, %v263
      %v360 = vshrl.u32 %v359, 4
      %v361 = vand.u32 %v359, 15
      %v362 = vsub.s32 0, %v361
      %v363 = vsel %vm357, %v362, %v361
      %vm364 = vcmp.lt.s32.totalorder %v264, 0
      %v365 = vsub.s32 0, %v264
      %v366 = vsel %vm364, %v365, %v264
      %v367 = vshrl.u32 %v366, 4
      %v368 = vand.u32 %v366, 15
      %v369 = vsub.s32 0, %v368
      %v370 = vsel %vm364, %v369, %v368
      %vm371 = vcmp.lt.s32.totalorder %v265, 0
      %v372 = vsub.s32 0, %v265
      %v373 = vsel %vm371, %v372, %v265
      %v374 = vshrl.u32 %v373, 4
      %v375 = vand.u32 %v373, 15
      %v376 = vsub.s32 0, %v375
      %v377 = vsel %vm371, %v376, %v375
      %vm378 = vcmp.ne.s32.totalorder %v272, 0
      %vm379 = vcmp.ne.s32.totalorder %v279, 0
      %vm380 = vcmp.ne.s32.totalorder %v286, 0
      %vm381 = vcmp.ne.s32.totalorder %v293, 0
      %vm382 = vcmp.ne.s32.totalorder %v300, 0
      %vm383 = vcmp.ne.s32.totalorder %v307, 0
      %vm384 = vcmp.ne.s32.totalorder %v314, 0
      %vm385 = vcmp.ne.s32.totalorder %v321, 0
      %vm386 = vcmp.ne.s32.totalorder %v328, 0
      %vm387 = vcmp.ne.s32.totalorder %v335, 0
      %vm388 = vcmp.ne.s32.totalorder %v342, 0
      %vm389 = vcmp.ne.s32.totalorder %v349, 0
      %vm390 = vcmp.ne.s32.totalorder %v356, 0
      %vm391 = vcmp.ne.s32.totalorder %v363, 0
      %vm392 = vcmp.ne.s32.totalorder %v370, 0
      %vm393 = vcmp.ne.s32.totalorder %v377, 0
      %vm394 = vcmp.lt.s32.totalorder %v272, 0
      %vm395 = vcmp.lt.s32.totalorder %v279, 0
      %vm396 = vcmp.lt.s32.totalorder %v286, 0
      %vm397 = vcmp.lt.s32.totalorder %v293, 0
      %vm398 = vcmp.lt.s32.totalorder %v300, 0
      %vm399 = vcmp.lt.s32.totalorder %v307, 0
      %vm400 = vcmp.lt.s32.totalorder %v314, 0
      %vm401 = vcmp.lt.s32.totalorder %v321, 0
      %vm402 = vcmp.lt.s32.totalorder %v328, 0
      %vm403 = vcmp.lt.s32.totalorder %v335, 0
      %vm404 = vcmp.lt.s32.totalorder %v342, 0
      %vm405 = vcmp.lt.s32.totalorder %v349, 0
      %vm406 = vcmp.lt.s32.totalorder %v356, 0
      %vm407 = vcmp.lt.s32.totalorder %v363, 0
      %vm408 = vcmp.lt.s32.totalorder %v370, 0
      %vm409 = vcmp.lt.s32.totalorder %v377, 0
      %vm410 = vmand %vm394, %vm378
      %vm411 = vmand %vm395, %vm379
      %vm412 = vmand %vm396, %vm380
      %vm413 = vmand %vm397, %vm381
      %vm414 = vmand %vm398, %vm382
      %vm415 = vmand %vm399, %vm383
      %vm416 = vmand %vm400, %vm384
      %vm417 = vmand %vm401, %vm385
      %vm418 = vmand %vm402, %vm386
      %vm419 = vmand %vm403, %vm387
      %vm420 = vmand %vm404, %vm388
      %vm421 = vmand %vm405, %vm389
      %vm422 = vmand %vm406, %vm390
      %vm423 = vmand %vm407, %vm391
      %vm424 = vmand %vm408, %vm392
      %vm425 = vmand %vm409, %vm393
      %v426 = vadd.s32 %v272, 16
      %v427 = vadd.s32 %v279, 16
      %v428 = vadd.s32 %v286, 16
      %v429 = vadd.s32 %v293, 16
      %v430 = vadd.s32 %v300, 16
      %v431 = vadd.s32 %v307, 16
      %v432 = vadd.s32 %v314, 16
      %v433 = vadd.s32 %v321, 16
      %v434 = vadd.s32 %v328, 16
      %v435 = vadd.s32 %v335, 16
      %v436 = vadd.s32 %v342, 16
      %v437 = vadd.s32 %v349, 16
      %v438 = vadd.s32 %v356, 16
      %v439 = vadd.s32 %v363, 16
      %v440 = vadd.s32 %v370, 16
      %v441 = vadd.s32 %v377, 16
      %v442 = vsel %vm410, %v426, %v272
      %v443 = vsel %vm411, %v427, %v279
      %v444 = vsel %vm412, %v428, %v286
      %v445 = vsel %vm413, %v429, %v293
      %v446 = vsel %vm414, %v430, %v300
      %v447 = vsel %vm415, %v431, %v307
      %v448 = vsel %vm416, %v432, %v314
      %v449 = vsel %vm417, %v433, %v321
      %v450 = vsel %vm418, %v434, %v328
      %v451 = vsel %vm419, %v435, %v335
      %v452 = vsel %vm420, %v436, %v342
      %v453 = vsel %vm421, %v437, %v349
      %v454 = vsel %vm422, %v438, %v356
      %v455 = vsel %vm423, %v439, %v363
      %v456 = vsel %vm424, %v440, %v370
      %v457 = vsel %vm425, %v441, %v377
      %vm458 = vcmp.gt.s32.totalorder %v442, 0
      %vm459 = vcmp.gt.s32.totalorder %v443, 0
      %vm460 = vcmp.gt.s32.totalorder %v444, 0
      %vm461 = vcmp.gt.s32.totalorder %v445, 0
      %vm462 = vcmp.gt.s32.totalorder %v446, 0
      %vm463 = vcmp.gt.s32.totalorder %v447, 0
      %vm464 = vcmp.gt.s32.totalorder %v448, 0
      %vm465 = vcmp.gt.s32.totalorder %v449, 0
      %vm466 = vcmp.gt.s32.totalorder %v450, 0
      %vm467 = vcmp.gt.s32.totalorder %v451, 0
      %vm468 = vcmp.gt.s32.totalorder %v452, 0
      %vm469 = vcmp.gt.s32.totalorder %v453, 0
      %vm470 = vcmp.gt.s32.totalorder %v454, 0
      %vm471 = vcmp.gt.s32.totalorder %v455, 0
      %vm472 = vcmp.gt.s32.totalorder %v456, 0
      %vm473 = vcmp.gt.s32.totalorder %v457, 0
      %vm474 = vcmp.lt.s32.totalorder %v442, 15
      %vm475 = vcmp.lt.s32.totalorder %v443, 15
      %vm476 = vcmp.lt.s32.totalorder %v444, 15
      %vm477 = vcmp.lt.s32.totalorder %v445, 15
      %vm478 = vcmp.lt.s32.totalorder %v446, 15
      %vm479 = vcmp.lt.s32.totalorder %v447, 15
      %vm480 = vcmp.lt.s32.totalorder %v448, 15
      %vm481 = vcmp.lt.s32.totalorder %v449, 15
      %vm482 = vcmp.lt.s32.totalorder %v450, 15
      %vm483 = vcmp.lt.s32.totalorder %v451, 15
      %vm484 = vcmp.lt.s32.totalorder %v452, 15
      %vm485 = vcmp.lt.s32.totalorder %v453, 15
      %vm486 = vcmp.lt.s32.totalorder %v454, 15
      %vm487 = vcmp.lt.s32.totalorder %v455, 15
      %vm488 = vcmp.lt.s32.totalorder %v456, 15
      %vm489 = vcmp.lt.s32.totalorder %v457, 15
      %s490 = smul.u32 %s21, 128
      %s491 = sshra.s32 %s490, 3
      %s492 = sand.u32 %s490, 7
      %s493 = smul.addr %s491, 4
      %s494 = scalar_lea.vmem %s237, %s493
      %v495 = vld [vmem:[%s494] sm:$0xf]
      %v496 = vld [vmem:[%s494 + $0x4] sm:$0xf]
      %v497 = vld [vmem:[%s494 + $0x8] sm:$0xf]
      %v498 = vld [vmem:[%s494 + $0xc] sm:$0xf]
      %v499 = vld [vmem:[%s494 + $0x10] sm:$0xf]
      %v500 = vld [vmem:[%s494 + $0x14] sm:$0xf]
      %v501 = vld [vmem:[%s494 + $0x18] sm:$0xf]
      %v502 = vld [vmem:[%s494 + $0x1c] sm:$0xf]
      %v503 = vld [vmem:[%s494 + $0x20] sm:$0xf]
      %v504 = vld [vmem:[%s494 + $0x24] sm:$0xf]
      %v505 = vld [vmem:[%s494 + $0x28] sm:$0xf]
      %v506 = vld [vmem:[%s494 + $0x2c] sm:$0xf]
      %v507 = vld [vmem:[%s494 + $0x30] sm:$0xf]
      %v508 = vld [vmem:[%s494 + $0x34] sm:$0xf]
      %v509 = vld [vmem:[%s494 + $0x38] sm:$0xf]
      %v510 = vld [vmem:[%s494 + $0x3c] sm:$0xf]
      %s511 = scalar_lea.vmem %s1, 8
      %v512 = vld [vmem:[%s511] sm:$0xf]
      %v513 = vld [vmem:[%s511 + $0x4] sm:$0xf]
      %v514 = vld [vmem:[%s1] sm:$0xf]
      %v515 = vld [vmem:[%s1 + $0x4] sm:$0xf]
      %v532 = vunpack.c.l.b16 %v495
      %v533 = vunpack.c.l.b16 %v496
      %v534 = vunpack.c.l.b16 %v497
      %v535 = vunpack.c.l.b16 %v498
      %v536 = vunpack.c.l.b16 %v499
      %v537 = vunpack.c.l.b16 %v500
      %v538 = vunpack.c.l.b16 %v501
      %v539 = vunpack.c.l.b16 %v502
      %v540 = vunpack.c.l.b16 %v503
      %v541 = vunpack.c.l.b16 %v504
      %v542 = vunpack.c.l.b16 %v505
      %v543 = vunpack.c.l.b16 %v506
      %v544 = vunpack.c.l.b16 %v507
      %v545 = vunpack.c.l.b16 %v508
      %v546 = vunpack.c.l.b16 %v509
      %v547 = vunpack.c.l.b16 %v510
      %v548 = vpack.c.b16 %v533, %v532
      %v549 = vpack.c.b16 %v535, %v534
      %v550 = vpack.c.b16 %v537, %v536
      %v551 = vpack.c.b16 %v539, %v538
      %v552 = vpack.c.b16 %v541, %v540
      %v553 = vpack.c.b16 %v543, %v542
      %v554 = vpack.c.b16 %v545, %v544
      %v555 = vpack.c.b16 %v547, %v546
      %v558 = vunpack.c.l.b16 %v514
      %v559 = vunpack.c.l.b16 %v515
      %v560 = vpack.c.b16 %v559, %v558
      %vm562 = vcmask 130048
      %v564 = vsel %vm562, %v548, 0
      %v567 = vsel %vm562, %v549, 0
      %v570 = vsel %vm562, %v550, 0
      %v573 = vsel %vm562, %v551, 0
      %v576 = vsel %vm562, %v552, 0
      %v579 = vsel %vm562, %v553, 0
      %v582 = vsel %vm562, %v554, 0
      %v585 = vsel %vm562, %v555, 0
      %587 = vmatprep.subr.bf16.mxu0 0
      %588 = vmatpush1.bf16.msra.mxu0 %v560
      %589 = vmatprep.subr.bf16.mxu0 0
      %590 = vmatpush1.bf16.msra.mxu0 0
      %591 = vmatprep.subr.bf16.mxu0 0
      %592 = vmatpush1.bf16.msra.mxu0 0
      %593 = vmatprep.subr.bf16.mxu0 0
      %594 = vmatpush1.bf16.msra.mxu0 0
      %595 = vmatprep.subr.bf16.mxu0 0
      %596 = vmatpush1.bf16.msra.mxu0 0
      %597 = vmatprep.subr.bf16.mxu0 0
      %598 = vmatpush1.bf16.msra.mxu0 0
      %599 = vmatprep.subr.bf16.mxu0 0
      %600 = vmatpush1.bf16.msra.mxu0 0
      %601 = vmatprep.subr.bf16.mxu0 0
      %602 = vmatpush1.bf16.msra.mxu0 0
      %603 = vmatprep.subr.bf16.mxu0 0
      %604 = vmatpush1.bf16.msra.mxu0 0
      %605 = vmatprep.subr.bf16.mxu0 0
      %606 = vmatpush1.bf16.msra.mxu0 0
      %607 = vmatprep.subr.bf16.mxu0 0
      %608 = vmatpush1.bf16.msra.mxu0 0
      %609 = vmatprep.subr.bf16.mxu0 0
      %610 = vmatpush1.bf16.msra.mxu0 0
      %611 = vmatprep.subr.bf16.mxu0 0
      %612 = vmatpush1.bf16.msra.mxu0 0
      %613 = vmatprep.subr.bf16.mxu0 0
      %614 = vmatpush1.bf16.msra.mxu0 0
      %615 = vmatprep.subr.bf16.mxu0 0
      %616 = vmatpush1.bf16.msra.mxu0 0
      %617 = vmatprep.subr.bf16.mxu0 0
      %618 = vmatpush1.bf16.msra.mxu0 0
      %619 = vmatprep.mubr.bf16.mxu0 0
      %620 = vmatmul.mubr.bf16.gmra.mrb[0].mxu0 %v564
      %v621 = vpop.f32.mrb[0].mxu0
      %v622 = vadd.f32 0.0, %v621
      %v623 = vpop.f32.mrb[0].mxu0
      %v624 = vpop.f32.mrb[0].mxu0
      %v625 = vadd.f32 0.0, %v624
      %v626 = vpop.f32.mrb[0].mxu0
      %627 = vmatprep.mubr.bf16.mxu0 0
      %628 = vmatmul.mubr.bf16.gmra.mrb[0].mxu0 %v567
      %v629 = vpop.f32.mrb[0].mxu0
      %v630 = vadd.f32 0.0, %v629
      %v631 = vpop.f32.mrb[0].mxu0
      %v632 = vpop.f32.mrb[0].mxu0
      %v633 = vadd.f32 0.0, %v632
      %v634 = vpop.f32.mrb[0].mxu0
      %635 = vmatprep.mubr.bf16.mxu0 0
      %636 = vmatmul.mubr.bf16.gmra.mrb[0].mxu0 %v570
      %v637 = vpop.f32.mrb[0].mxu0
      %v638 = vadd.f32 0.0, %v637
      %v639 = vpop.f32.mrb[0].mxu0
      %v640 = vpop.f32.mrb[0].mxu0
      %v641 = vadd.f32 0.0, %v640
      %v642 = vpop.f32.mrb[0].mxu0
      %643 = vmatprep.mubr.bf16.mxu0 0
      %644 = vmatmul.mubr.bf16.gmra.mrb[0].mxu0 %v573
      %v645 = vpop.f32.mrb[0].mxu0
      %v646 = vadd.f32 0.0, %v645
      %v647 = vpop.f32.mrb[0].mxu0
      %v648 = vpop.f32.mrb[0].mxu0
      %v649 = vadd.f32 0.0, %v648
      %v650 = vpop.f32.mrb[0].mxu0
      %651 = vmatprep.mubr.bf16.mxu0 0
      %652 = vmatmul.mubr.bf16.gmra.mrb[0].mxu0 %v576
      %v653 = vpop.f32.mrb[0].mxu0
      %v654 = vadd.f32 0.0, %v653
      %v655 = vpop.f32.mrb[0].mxu0
      %v656 = vpop.f32.mrb[0].mxu0
      %v657 = vadd.f32 0.0, %v656
      %v658 = vpop.f32.mrb[0].mxu0
      %659 = vmatprep.mubr.bf16.mxu0 0
      %660 = vmatmul.mubr.bf16.gmra.mrb[0].mxu0 %v579
      %v661 = vpop.f32.mrb[0].mxu0
      %v662 = vadd.f32 0.0, %v661
      %v663 = vpop.f32.mrb[0].mxu0
      %v664 = vpop.f32.mrb[0].mxu0
      %v665 = vadd.f32 0.0, %v664
      %v666 = vpop.f32.mrb[0].mxu0
      %667 = vmatprep.mubr.bf16.mxu0 0
      %668 = vmatmul.mubr.bf16.gmra.mrb[0].mxu0 %v582
      %v669 = vpop.f32.mrb[0].mxu0
      %v670 = vadd.f32 0.0, %v669
      %v671 = vpop.f32.mrb[0].mxu0
      %v672 = vpop.f32.mrb[0].mxu0
      %v673 = vadd.f32 0.0, %v672
      %v674 = vpop.f32.mrb[0].mxu0
      %675 = vmatprep.mubr.bf16.mxu0 0
      %676 = vmatmul.mubr.bf16.gmra.mrb[0].mxu0 %v585
      %v677 = vpop.f32.mrb[0].mxu0
      %v678 = vadd.f32 0.0, %v677
      %v679 = vpop.f32.mrb[0].mxu0
      %v680 = vpop.f32.mrb[0].mxu0
      %v681 = vadd.f32 0.0, %v680
      %v682 = vpop.f32.mrb[0].mxu0
      %683 = vdwg.mxu0
      %v684 = vrot.slane %v622, 7
      %v685 = vrot.slane %v625, 7
      %v686 = vrot.slane %v630, 7
      %v687 = vrot.slane %v633, 7
      %v688 = vrot.slane %v638, 7
      %v689 = vrot.slane %v641, 7
      %v690 = vrot.slane %v646, 7
      %v691 = vrot.slane %v649, 7
      %v692 = vrot.slane %v654, 7
      %v693 = vrot.slane %v657, 7
      %v694 = vrot.slane %v662, 7
      %v695 = vrot.slane %v665, 7
      %v696 = vrot.slane %v670, 7
      %v697 = vrot.slane %v673, 7
      %v698 = vrot.slane %v678, 7
      %v699 = vrot.slane %v681, 7
      %vm700 = vcmp.lt.s32.totalorder %v250, 1
      %v701 = vsel %vm700, %v698, %v699
      %v702 = vsel %vm700, %v697, %v698
      %v703 = vsel %vm700, %v696, %v697
      %v704 = vsel %vm700, %v695, %v696
      %v705 = vsel %vm700, %v694, %v695
      %v706 = vsel %vm700, %v693, %v694
      %v707 = vsel %vm700, %v692, %v693
      %v708 = vsel %vm700, %v691, %v692
      %v709 = vsel %vm700, %v690, %v691
      %v710 = vsel %vm700, %v689, %v690
      %v711 = vsel %vm700, %v688, %v689
      %v712 = vsel %vm700, %v687, %v688
      %v713 = vsel %vm700, %v686, %v687
      %v714 = vsel %vm700, %v685, %v686
      %v715 = vsel %vm700, %v684, %v685
      %v716 = vsel %vm700, %v699, %v684
      %v717 = vsel %vm458, 1, 0
      %v718 = vsel %vm459, 1, 0
      %v719 = vsel %vm460, 1, 0
      %v720 = vsel %vm461, 1, 0
      %v721 = vsel %vm462, 1, 0
      %v722 = vsel %vm463, 1, 0
      %v723 = vsel %vm464, 1, 0
      %v724 = vsel %vm465, 1, 0
      %v725 = vsel %vm466, 1, 0
      %v726 = vsel %vm467, 1, 0
      %v727 = vsel %vm468, 1, 0
      %v728 = vsel %vm469, 1, 0
      %v729 = vsel %vm470, 1, 0
      %v730 = vsel %vm471, 1, 0
      %v731 = vsel %vm472, 1, 0
      %v732 = vsel %vm473, 1, 0
      %vm733 = vcmp.eq.s32.totalorder %v717, 1
      %vm734 = vcmp.eq.s32.totalorder %v718, 1
      %vm735 = vcmp.eq.s32.totalorder %v719, 1
      %vm736 = vcmp.eq.s32.totalorder %v720, 1
      %vm737 = vcmp.eq.s32.totalorder %v721, 1
      %vm738 = vcmp.eq.s32.totalorder %v722, 1
      %vm739 = vcmp.eq.s32.totalorder %v723, 1
      %vm740 = vcmp.eq.s32.totalorder %v724, 1
      %vm741 = vcmp.eq.s32.totalorder %v725, 1
      %vm742 = vcmp.eq.s32.totalorder %v726, 1
      %vm743 = vcmp.eq.s32.totalorder %v727, 1
      %vm744 = vcmp.eq.s32.totalorder %v728, 1
      %vm745 = vcmp.eq.s32.totalorder %v729, 1
      %vm746 = vcmp.eq.s32.totalorder %v730, 1
      %vm747 = vcmp.eq.s32.totalorder %v731, 1
      %vm748 = vcmp.eq.s32.totalorder %v732, 1
      %v749 = vsel %vm733, %v716, 0.0
      %v750 = vsel %vm734, %v715, 0.0
      %v751 = vsel %vm735, %v714, 0.0
      %v752 = vsel %vm736, %v713, 0.0
      %v753 = vsel %vm737, %v712, 0.0
      %v754 = vsel %vm738, %v711, 0.0
      %v755 = vsel %vm739, %v710, 0.0
      %v756 = vsel %vm740, %v709, 0.0
      %v757 = vsel %vm741, %v708, 0.0
      %v758 = vsel %vm742, %v707, 0.0
      %v759 = vsel %vm743, %v706, 0.0
      %v760 = vsel %vm744, %v705, 0.0
      %v761 = vsel %vm745, %v704, 0.0
      %v762 = vsel %vm746, %v703, 0.0
      %v763 = vsel %vm747, %v702, 0.0
      %v764 = vsel %vm748, %v701, 0.0
      %v767 = vunpack.c.l.b16 %v512
      %v768 = vunpack.c.l.b16 %v513
      %v769 = vpack.c.b16 %v768, %v767
      %771 = vmatprep.subr.bf16.mxu0 0
      %772 = vmatpush1.bf16.msra.mxu0 %v769
      %773 = vmatprep.subr.bf16.mxu0 0
      %774 = vmatpush1.bf16.msra.mxu0 0
      %775 = vmatprep.subr.bf16.mxu0 0
      %776 = vmatpush1.bf16.msra.mxu0 0
      %777 = vmatprep.subr.bf16.mxu0 0
      %778 = vmatpush1.bf16.msra.mxu0 0
      %779 = vmatprep.subr.bf16.mxu0 0
      %780 = vmatpush1.bf16.msra.mxu0 0
      %781 = vmatprep.subr.bf16.mxu0 0
      %782 = vmatpush1.bf16.msra.mxu0 0
      %783 = vmatprep.subr.bf16.mxu0 0
      %784 = vmatpush1.bf16.msra.mxu0 0
      %785 = vmatprep.subr.bf16.mxu0 0
      %786 = vmatpush1.bf16.msra.mxu0 0
      %787 = vmatprep.subr.bf16.mxu0 0
      %788 = vmatpush1.bf16.msra.mxu0 0
      %789 = vmatprep.subr.bf16.mxu0 0
      %790 = vmatpush1.bf16.msra.mxu0 0
      %791 = vmatprep.subr.bf16.mxu0 0
      %792 = vmatpush1.bf16.msra.mxu0 0
      %793 = vmatprep.subr.bf16.mxu0 0
      %794 = vmatpush1.bf16.msra.mxu0 0
      %795 = vmatprep.subr.bf16.mxu0 0
      %796 = vmatpush1.bf16.msra.mxu0 0
      %797 = vmatprep.subr.bf16.mxu0 0
      %798 = vmatpush1.bf16.msra.mxu0 0
      %799 = vmatprep.subr.bf16.mxu0 0
      %800 = vmatpush1.bf16.msra.mxu0 0
      %801 = vmatprep.subr.bf16.mxu0 0
      %802 = vmatpush1.bf16.msra.mxu0 0
      %803 = vmatprep.mubr.bf16.mxu0 0
      %804 = vmatmul.mubr.bf16.gmra.mrb[0].mxu0 %v564
      %v805 = vpop.f32.mrb[0].mxu0
      %v806 = vadd.f32 %v749, %v805
      %v807 = vpop.f32.mrb[0].mxu0
      %v808 = vpop.f32.mrb[0].mxu0
      %v809 = vadd.f32 %v750, %v808
      %v810 = vpop.f32.mrb[0].mxu0
      %811 = vmatprep.mubr.bf16.mxu0 0
      %812 = vmatmul.mubr.bf16.gmra.mrb[0].mxu0 %v567
      %v813 = vpop.f32.mrb[0].mxu0
      %v814 = vadd.f32 %v751, %v813
      %v815 = vpop.f32.mrb[0].mxu0
      %v816 = vpop.f32.mrb[0].mxu0
      %v817 = vadd.f32 %v752, %v816
      %v818 = vpop.f32.mrb[0].mxu0
      %819 = vmatprep.mubr.bf16.mxu0 0
      %820 = vmatmul.mubr.bf16.gmra.mrb[0].mxu0 %v570
      %v821 = vpop.f32.mrb[0].mxu0
      %v822 = vadd.f32 %v753, %v821
      %v823 = vpop.f32.mrb[0].mxu0
      %v824 = vpop.f32.mrb[0].mxu0
      %v825 = vadd.f32 %v754, %v824
      %v826 = vpop.f32.mrb[0].mxu0
      %827 = vmatprep.mubr.bf16.mxu0 0
      %828 = vmatmul.mubr.bf16.gmra.mrb[0].mxu0 %v573
      %v829 = vpop.f32.mrb[0].mxu0
      %v830 = vadd.f32 %v755, %v829
      %v831 = vpop.f32.mrb[0].mxu0
      %v832 = vpop.f32.mrb[0].mxu0
      %v833 = vadd.f32 %v756, %v832
      %v834 = vpop.f32.mrb[0].mxu0
      %835 = vmatprep.mubr.bf16.mxu0 0
      %836 = vmatmul.mubr.bf16.gmra.mrb[0].mxu0 %v576
      %v837 = vpop.f32.mrb[0].mxu0
      %v838 = vadd.f32 %v757, %v837
      %v839 = vpop.f32.mrb[0].mxu0
      %v840 = vpop.f32.mrb[0].mxu0
      %v841 = vadd.f32 %v758, %v840
      %v842 = vpop.f32.mrb[0].mxu0
      %843 = vmatprep.mubr.bf16.mxu0 0
      %844 = vmatmul.mubr.bf16.gmra.mrb[0].mxu0 %v579
      %v845 = vpop.f32.mrb[0].mxu0
      %v846 = vadd.f32 %v759, %v845
      %v847 = vpop.f32.mrb[0].mxu0
      %v848 = vpop.f32.mrb[0].mxu0
      %v849 = vadd.f32 %v760, %v848
      %v850 = vpop.f32.mrb[0].mxu0
      %851 = vmatprep.mubr.bf16.mxu0 0
      %852 = vmatmul.mubr.bf16.gmra.mrb[0].mxu0 %v582
      %v853 = vpop.f32.mrb[0].mxu0
      %v854 = vadd.f32 %v761, %v853
      %v855 = vpop.f32.mrb[0].mxu0
      %v856 = vpop.f32.mrb[0].mxu0
      %v857 = vadd.f32 %v762, %v856
      %v858 = vpop.f32.mrb[0].mxu0
      %859 = vmatprep.mubr.bf16.mxu0 0
      %860 = vmatmul.mubr.bf16.gmra.mrb[0].mxu0 %v585
      %v861 = vpop.f32.mrb[0].mxu0
      %v862 = vadd.f32 %v763, %v861
      %v863 = vpop.f32.mrb[0].mxu0
      %v864 = vpop.f32.mrb[0].mxu0
      %v865 = vadd.f32 %v764, %v864
      %v866 = vpop.f32.mrb[0].mxu0
      %867 = vdwg.mxu0
      %s868 = scalar_lea.vmem %s1, 16
      %v869 = vld [vmem:[%s868] sm:$0xf]
      %v870 = vld [vmem:[%s868 + $0x4] sm:$0xf]
      %v873 = vunpack.c.l.b16 %v869
      %v874 = vunpack.c.l.b16 %v870
      %v875 = vpack.c.b16 %v874, %v873
      %877 = vmatprep.subr.bf16.mxu0 0
      %878 = vmatpush1.bf16.msra.mxu0 %v875
      %879 = vmatprep.subr.bf16.mxu0 0
      %880 = vmatpush1.bf16.msra.mxu0 0
      %881 = vmatprep.subr.bf16.mxu0 0
      %882 = vmatpush1.bf16.msra.mxu0 0
      %883 = vmatprep.subr.bf16.mxu0 0
      %884 = vmatpush1.bf16.msra.mxu0 0
      %885 = vmatprep.subr.bf16.mxu0 0
      %886 = vmatpush1.bf16.msra.mxu0 0
      %887 = vmatprep.subr.bf16.mxu0 0
      %888 = vmatpush1.bf16.msra.mxu0 0
      %889 = vmatprep.subr.bf16.mxu0 0
      %890 = vmatpush1.bf16.msra.mxu0 0
      %891 = vmatprep.subr.bf16.mxu0 0
      %892 = vmatpush1.bf16.msra.mxu0 0
      %893 = vmatprep.subr.bf16.mxu0 0
      %894 = vmatpush1.bf16.msra.mxu0 0
      %895 = vmatprep.subr.bf16.mxu0 0
      %896 = vmatpush1.bf16.msra.mxu0 0
      %897 = vmatprep.subr.bf16.mxu0 0
      %898 = vmatpush1.bf16.msra.mxu0 0
      %899 = vmatprep.subr.bf16.mxu0 0
      %900 = vmatpush1.bf16.msra.mxu0 0
      %901 = vmatprep.subr.bf16.mxu0 0
      %902 = vmatpush1.bf16.msra.mxu0 0
      %903 = vmatprep.subr.bf16.mxu0 0
      %904 = vmatpush1.bf16.msra.mxu0 0
      %905 = vmatprep.subr.bf16.mxu0 0
      %906 = vmatpush1.bf16.msra.mxu0 0
      %907 = vmatprep.subr.bf16.mxu0 0
      %908 = vmatpush1.bf16.msra.mxu0 0
      %909 = vmatprep.mubr.bf16.mxu0 0
      %910 = vmatmul.mubr.bf16.gmra.mrb[0].mxu0 %v564
      %v911 = vpop.f32.mrb[0].mxu0
      %v912 = vadd.f32 0.0, %v911
      %v913 = vpop.f32.mrb[0].mxu0
      %v914 = vpop.f32.mrb[0].mxu0
      %v915 = vadd.f32 0.0, %v914
      %v916 = vpop.f32.mrb[0].mxu0
      %917 = vmatprep.mubr.bf16.mxu0 0
      %918 = vmatmul.mubr.bf16.gmra.mrb[0].mxu0 %v567
      %v919 = vpop.f32.mrb[0].mxu0
      %v920 = vadd.f32 0.0, %v919
      %v921 = vpop.f32.mrb[0].mxu0
      %v922 = vpop.f32.mrb[0].mxu0
      %v923 = vadd.f32 0.0, %v922
      %v924 = vpop.f32.mrb[0].mxu0
      %925 = vmatprep.mubr.bf16.mxu0 0
      %926 = vmatmul.mubr.bf16.gmra.mrb[0].mxu0 %v570
      %v927 = vpop.f32.mrb[0].mxu0
      %v928 = vadd.f32 0.0, %v927
      %v929 = vpop.f32.mrb[0].mxu0
      %v930 = vpop.f32.mrb[0].mxu0
      %v931 = vadd.f32 0.0, %v930
      %v932 = vpop.f32.mrb[0].mxu0
      %933 = vmatprep.mubr.bf16.mxu0 0
      %934 = vmatmul.mubr.bf16.gmra.mrb[0].mxu0 %v573
      %v935 = vpop.f32.mrb[0].mxu0
      %v936 = vadd.f32 0.0, %v935
      %v937 = vpop.f32.mrb[0].mxu0
      %v938 = vpop.f32.mrb[0].mxu0
      %v939 = vadd.f32 0.0, %v938
      %v940 = vpop.f32.mrb[0].mxu0
      %941 = vmatprep.mubr.bf16.mxu0 0
      %942 = vmatmul.mubr.bf16.gmra.mrb[0].mxu0 %v576
      %v943 = vpop.f32.mrb[0].mxu0
      %v944 = vadd.f32 0.0, %v943
      %v945 = vpop.f32.mrb[0].mxu0
      %v946 = vpop.f32.mrb[0].mxu0
      %v947 = vadd.f32 0.0, %v946
      %v948 = vpop.f32.mrb[0].mxu0
      %949 = vmatprep.mubr.bf16.mxu0 0
      %950 = vmatmul.mubr.bf16.gmra.mrb[0].mxu0 %v579
      %v951 = vpop.f32.mrb[0].mxu0
      %v952 = vadd.f32 0.0, %v951
      %v953 = vpop.f32.mrb[0].mxu0
      %v954 = vpop.f32.mrb[0].mxu0
      %v955 = vadd.f32 0.0, %v954
      %v956 = vpop.f32.mrb[0].mxu0
      %957 = vmatprep.mubr.bf16.mxu0 0
      %958 = vmatmul.mubr.bf16.gmra.mrb[0].mxu0 %v582
      %v959 = vpop.f32.mrb[0].mxu0
      %v960 = vadd.f32 0.0, %v959
      %v961 = vpop.f32.mrb[0].mxu0
      %v962 = vpop.f32.mrb[0].mxu0
      %v963 = vadd.f32 0.0, %v962
      %v964 = vpop.f32.mrb[0].mxu0
      %965 = vmatprep.mubr.bf16.mxu0 0
      %966 = vmatmul.mubr.bf16.gmra.mrb[0].mxu0 %v585
      %v967 = vpop.f32.mrb[0].mxu0
      %v968 = vadd.f32 0.0, %v967
      %v969 = vpop.f32.mrb[0].mxu0
      %v970 = vpop.f32.mrb[0].mxu0
      %v971 = vadd.f32 0.0, %v970
      %v972 = vpop.f32.mrb[0].mxu0
      %973 = vdwg.mxu0
      %v974 = vrot.slane %v912, 1
      %v975 = vrot.slane %v915, 1
      %v976 = vrot.slane %v920, 1
      %v977 = vrot.slane %v923, 1
      %v978 = vrot.slane %v928, 1
      %v979 = vrot.slane %v931, 1
      %v980 = vrot.slane %v936, 1
      %v981 = vrot.slane %v939, 1
      %v982 = vrot.slane %v944, 1
      %v983 = vrot.slane %v947, 1
      %v984 = vrot.slane %v952, 1
      %v985 = vrot.slane %v955, 1
      %v986 = vrot.slane %v960, 1
      %v987 = vrot.slane %v963, 1
      %v988 = vrot.slane %v968, 1
      %v989 = vrot.slane %v971, 1
      %vm990 = vcmp.lt.s32.totalorder %v250, 7
      %v991 = vsel %vm990, %v988, %v989
      %v992 = vsel %vm990, %v987, %v988
      %v993 = vsel %vm990, %v986, %v987
      %v994 = vsel %vm990, %v985, %v986
      %v995 = vsel %vm990, %v984, %v985
      %v996 = vsel %vm990, %v983, %v984
      %v997 = vsel %vm990, %v982, %v983
      %v998 = vsel %vm990, %v981, %v982
      %v999 = vsel %vm990, %v980, %v981
      %v1000 = vsel %vm990, %v979, %v980
      %v1001 = vsel %vm990, %v978, %v979
      %v1002 = vsel %vm990, %v977, %v978
      %v1003 = vsel %vm990, %v976, %v977
      %v1004 = vsel %vm990, %v975, %v976
      %v1005 = vsel %vm990, %v974, %v975
      %v1006 = vsel %vm990, %v989, %v974
      %v1007 = vsel %vm474, 1, 0
      %v1008 = vsel %vm475, 1, 0
      %v1009 = vsel %vm476, 1, 0
      %v1010 = vsel %vm477, 1, 0
      %v1011 = vsel %vm478, 1, 0
      %v1012 = vsel %vm479, 1, 0
      %v1013 = vsel %vm480, 1, 0
      %v1014 = vsel %vm481, 1, 0
      %v1015 = vsel %vm482, 1, 0
      %v1016 = vsel %vm483, 1, 0
      %v1017 = vsel %vm484, 1, 0
      %v1018 = vsel %vm485, 1, 0
      %v1019 = vsel %vm486, 1, 0
      %v1020 = vsel %vm487, 1, 0
      %v1021 = vsel %vm488, 1, 0
      %v1022 = vsel %vm489, 1, 0
      %vm1023 = vcmp.eq.s32.totalorder %v1007, 1
      %vm1024 = vcmp.eq.s32.totalorder %v1008, 1
      %vm1025 = vcmp.eq.s32.totalorder %v1009, 1
      %vm1026 = vcmp.eq.s32.totalorder %v1010, 1
      %vm1027 = vcmp.eq.s32.totalorder %v1011, 1
      %vm1028 = vcmp.eq.s32.totalorder %v1012, 1
      %vm1029 = vcmp.eq.s32.totalorder %v1013, 1
      %vm1030 = vcmp.eq.s32.totalorder %v1014, 1
      %vm1031 = vcmp.eq.s32.totalorder %v1015, 1
      %vm1032 = vcmp.eq.s32.totalorder %v1016, 1
      %vm1033 = vcmp.eq.s32.totalorder %v1017, 1
      %vm1034 = vcmp.eq.s32.totalorder %v1018, 1
      %vm1035 = vcmp.eq.s32.totalorder %v1019, 1
      %vm1036 = vcmp.eq.s32.totalorder %v1020, 1
      %vm1037 = vcmp.eq.s32.totalorder %v1021, 1
      %vm1038 = vcmp.eq.s32.totalorder %v1022, 1
      %v1039 = vsel %vm1023, %v1005, 0.0
      %v1040 = vsel %vm1024, %v1004, 0.0
      %v1041 = vsel %vm1025, %v1003, 0.0
      %v1042 = vsel %vm1026, %v1002, 0.0
      %v1043 = vsel %vm1027, %v1001, 0.0
      %v1044 = vsel %vm1028, %v1000, 0.0
      %v1045 = vsel %vm1029, %v999, 0.0
      %v1046 = vsel %vm1030, %v998, 0.0
      %v1047 = vsel %vm1031, %v997, 0.0
      %v1048 = vsel %vm1032, %v996, 0.0
      %v1049 = vsel %vm1033, %v995, 0.0
      %v1050 = vsel %vm1034, %v994, 0.0
      %v1051 = vsel %vm1035, %v993, 0.0
      %v1052 = vsel %vm1036, %v992, 0.0
      %v1053 = vsel %vm1037, %v991, 0.0
      %v1054 = vsel %vm1038, %v1006, 0.0
      %v1055 = vadd.f32 %v806, %v1039
      %v1056 = vadd.f32 %v809, %v1040
      %v1057 = vadd.f32 %v814, %v1041
      %v1058 = vadd.f32 %v817, %v1042
      %v1059 = vadd.f32 %v822, %v1043
      %v1060 = vadd.f32 %v825, %v1044
      %v1061 = vadd.f32 %v830, %v1045
      %v1062 = vadd.f32 %v833, %v1046
      %v1063 = vadd.f32 %v838, %v1047
      %v1064 = vadd.f32 %v841, %v1048
      %v1065 = vadd.f32 %v846, %v1049
      %v1066 = vadd.f32 %v849, %v1050
      %v1067 = vadd.f32 %v854, %v1051
      %v1068 = vadd.f32 %v857, %v1052
      %v1069 = vadd.f32 %v862, %v1053
      %v1070 = vadd.f32 %v865, %v1054
      %1071 = vst [vmem:[#allocation2] sm:$0xff] %v1055
      %1072 = vst [vmem:[#allocation2 + $0x8] sm:$0xff] %v1056
      %1073 = vst [vmem:[#allocation2 + $0x10] sm:$0xff] %v1057
      %1074 = vst [vmem:[#allocation2 + $0x18] sm:$0xff] %v1058
      %1075 = vst [vmem:[#allocation2 + $0x20] sm:$0xff] %v1059
      %1076 = vst [vmem:[#allocation2 + $0x28] sm:$0xff] %v1060
      %1077 = vst [vmem:[#allocation2 + $0x30] sm:$0xff] %v1061
      %1078 = vst [vmem:[#allocation2 + $0x38] sm:$0xff] %v1062
      %1079 = vst [vmem:[#allocation2 + $0x40] sm:$0xff] %v1063
      %1080 = vst [vmem:[#allocation2 + $0x48] sm:$0xff] %v1064
      %1081 = vst [vmem:[#allocation2 + $0x50] sm:$0xff] %v1065
      %1082 = vst [vmem:[#allocation2 + $0x58] sm:$0xff] %v1066
      %1083 = vst [vmem:[#allocation2 + $0x60] sm:$0xff] %v1067
      %1084 = vst [vmem:[#allocation2 + $0x68] sm:$0xff] %v1068
      %1085 = vst [vmem:[#allocation2 + $0x70] sm:$0xff] %v1069
      %1086 = vst [vmem:[#allocation2 + $0x78] sm:$0xff] %v1070
      %s1087 = smul.u32 %s21, 8
      %s1088 = sadd.s32 %s1087, 1
      %s1089 = smul.u32 %s1088, 16
      %s1090 = sshra.s32 %s1089, 3
      %s1091 = sand.u32 %s1089, 7
      %s1092 = smul.addr %s1090, 4
      %s1093 = scalar_lea.vmem %s237, %s1092
      %v1094 = vld [vmem:[%s1093] sm:$0xf]
      %v1095 = vld [vmem:[%s1093 + $0x4] sm:$0xf]
      %v1096 = vld [vmem:[%s1093 + $0x8] sm:$0xf]
      %v1097 = vld [vmem:[%s1093 + $0xc] sm:$0xf]
      %v1098 = vld [vmem:[%s1093 + $0x10] sm:$0xf]
      %v1099 = vld [vmem:[%s1093 + $0x14] sm:$0xf]
      %v1100 = vld [vmem:[%s1093 + $0x18] sm:$0xf]
      %v1101 = vld [vmem:[%s1093 + $0x1c] sm:$0xf]
      %v1102 = vld [vmem:[%s1093 + $0x20] sm:$0xf]
      %v1103 = vld [vmem:[%s1093 + $0x24] sm:$0xf]
      %v1104 = vld [vmem:[%s1093 + $0x28] sm:$0xf]
      %v1105 = vld [vmem:[%s1093 + $0x2c] sm:$0xf]
      %v1106 = vld [vmem:[%s1093 + $0x30] sm:$0xf]
      %v1107 = vld [vmem:[%s1093 + $0x34] sm:$0xf]
      %v1108 = vld [vmem:[%s1093 + $0x38] sm:$0xf]
      %v1109 = vld [vmem:[%s1093 + $0x3c] sm:$0xf]
      %s1110 = scalar_lea.vmem %s1, 32
      %v1111 = vld [vmem:[%s1110] sm:$0xf]
      %v1112 = vld [vmem:[%s1110 + $0x4] sm:$0xf]
      %s1113 = scalar_lea.vmem %s1, 24
      %v1114 = vld [vmem:[%s1113] sm:$0xf]
      %v1115 = vld [vmem:[%s1113 + $0x4] sm:$0xf]
      %v1132 = vunpack.c.l.b16 %v1094
      %v1133 = vunpack.c.l.b16 %v1095
      %v1134 = vunpack.c.l.b16 %v1096
      %v1135 = vunpack.c.l.b16 %v1097
      %v1136 = vunpack.c.l.b16 %v1098
      %v1137 = vunpack.c.l.b16 %v1099
      %v1138 = vunpack.c.l.b16 %v1100
      %v1139 = vunpack.c.l.b16 %v1101
      %v1140 = vunpack.c.l.b16 %v1102
      %v1141 = vunpack.c.l.b16 %v1103
      %v1142 = vunpack.c.l.b16 %v1104
      %v1143 = vunpack.c.l.b16 %v1105
      %v1144 = vunpack.c.l.b16 %v1106
      %v1145 = vunpack.c.l.b16 %v1107
      %v1146 = vunpack.c.l.b16 %v1108
      %v1147 = vunpack.c.l.b16 %v1109
      %v1148 = vpack.c.b16 %v1133, %v1132
      %v1149 = vpack.c.b16 %v1135, %v1134
      %v1150 = vpack.c.b16 %v1137, %v1136
      %v1151 = vpack.c.b16 %v1139, %v1138
      %v1152 = vpack.c.b16 %v1141, %v1140
      %v1153 = vpack.c.b16 %v1143, %v1142
      %v1154 = vpack.c.b16 %v1145, %v1144
      %v1155 = vpack.c.b16 %v1147, %v1146
      %v1158 = vunpack.c.l.b16 %v1114
      %v1159 = vunpack.c.l.b16 %v1115
      %v1160 = vpack.c.b16 %v1159, %v1158
      %v1163 = vsel %vm562, %v1148, 0
      %v1166 = vsel %vm562, %v1149, 0
      %v1169 = vsel %vm562, %v1150, 0
      %v1172 = vsel %vm562, %v1151, 0
      %v1175 = vsel %vm562, %v1152, 0
      %v1178 = vsel %vm562, %v1153, 0
      %v1181 = vsel %vm562, %v1154, 0
      %v1184 = vsel %vm562, %v1155, 0
      %1186 = vmatprep.subr.bf16.mxu0 0
      %1187 = vmatpush1.bf16.msra.mxu0 %v1160
      %1188 = vmatprep.subr.bf16.mxu0 0
      %1189 = vmatpush1.bf16.msra.mxu0 0
      %1190 = vmatprep.subr.bf16.mxu0 0
      %1191 = vmatpush1.bf16.msra.mxu0 0
      %1192 = vmatprep.subr.bf16.mxu0 0
      %1193 = vmatpush1.bf16.msra.mxu0 0
      %1194 = vmatprep.subr.bf16.mxu0 0
      %1195 = vmatpush1.bf16.msra.mxu0 0
      %1196 = vmatprep.subr.bf16.mxu0 0
      %1197 = vmatpush1.bf16.msra.mxu0 0
      %1198 = vmatprep.subr.bf16.mxu0 0
      %1199 = vmatpush1.bf16.msra.mxu0 0
      %1200 = vmatprep.subr.bf16.mxu0 0
      %1201 = vmatpush1.bf16.msra.mxu0 0
      %1202 = vmatprep.subr.bf16.mxu0 0
      %1203 = vmatpush1.bf16.msra.mxu0 0
      %1204 = vmatprep.subr.bf16.mxu0 0
      %1205 = vmatpush1.bf16.msra.mxu0 0
      %1206 = vmatprep.subr.bf16.mxu0 0
      %1207 = vmatpush1.bf16.msra.mxu0 0
      %1208 = vmatprep.subr.bf16.mxu0 0
      %1209 = vmatpush1.bf16.msra.mxu0 0
      %1210 = vmatprep.subr.bf16.mxu0 0
      %1211 = vmatpush1.bf16.msra.mxu0 0
      %1212 = vmatprep.subr.bf16.mxu0 0
      %1213 = vmatpush1.bf16.msra.mxu0 0
      %1214 = vmatprep.subr.bf16.mxu0 0
      %1215 = vmatpush1.bf16.msra.mxu0 0
      %1216 = vmatprep.subr.bf16.mxu0 0
      %1217 = vmatpush1.bf16.msra.mxu0 0
      %1218 = vmatprep.mubr.bf16.mxu0 0
      %1219 = vmatmul.mubr.bf16.gmra.mrb[0].mxu0 %v1163
      %v1220 = vpop.f32.mrb[0].mxu0
      %v1221 = vadd.f32 0.0, %v1220
      %v1222 = vpop.f32.mrb[0].mxu0
      %v1223 = vpop.f32.mrb[0].mxu0
      %v1224 = vadd.f32 0.0, %v1223
      %v1225 = vpop.f32.mrb[0].mxu0
      %1226 = vmatprep.mubr.bf16.mxu0 0
      %1227 = vmatmul.mubr.bf16.gmra.mrb[0].mxu0 %v1166
      %v1228 = vpop.f32.mrb[0].mxu0
      %v1229 = vadd.f32 0.0, %v1228
      %v1230 = vpop.f32.mrb[0].mxu0
      %v1231 = vpop.f32.mrb[0].mxu0
      %v1232 = vadd.f32 0.0, %v1231
      %v1233 = vpop.f32.mrb[0].mxu0
      %1234 = vmatprep.mubr.bf16.mxu0 0
      %1235 = vmatmul.mubr.bf16.gmra.mrb[0].mxu0 %v1169
      %v1236 = vpop.f32.mrb[0].mxu0
      %v1237 = vadd.f32 0.0, %v1236
      %v1238 = vpop.f32.mrb[0].mxu0
      %v1239 = vpop.f32.mrb[0].mxu0
      %v1240 = vadd.f32 0.0, %v1239
      %v1241 = vpop.f32.mrb[0].mxu0
      %1242 = vmatprep.mubr.bf16.mxu0 0
      %1243 = vmatmul.mubr.bf16.gmra.mrb[0].mxu0 %v1172
      %v1244 = vpop.f32.mrb[0].mxu0
      %v1245 = vadd.f32 0.0, %v1244
      %v1246 = vpop.f32.mrb[0].mxu0
      %v1247 = vpop.f32.mrb[0].mxu0
      %v1248 = vadd.f32 0.0, %v1247
      %v1249 = vpop.f32.mrb[0].mxu0
      %1250 = vmatprep.mubr.bf16.mxu0 0
      %1251 = vmatmul.mubr.bf16.gmra.mrb[0].mxu0 %v1175
      %v1252 = vpop.f32.mrb[0].mxu0
      %v1253 = vadd.f32 0.0, %v1252
      %v1254 = vpop.f32.mrb[0].mxu0
      %v1255 = vpop.f32.mrb[0].mxu0
      %v1256 = vadd.f32 0.0, %v1255
      %v1257 = vpop.f32.mrb[0].mxu0
      %1258 = vmatprep.mubr.bf16.mxu0 0
      %1259 = vmatmul.mubr.bf16.gmra.mrb[0].mxu0 %v1178
      %v1260 = vpop.f32.mrb[0].mxu0
      %v1261 = vadd.f32 0.0, %v1260
      %v1262 = vpop.f32.mrb[0].mxu0
      %v1263 = vpop.f32.mrb[0].mxu0
      %v1264 = vadd.f32 0.0, %v1263
      %v1265 = vpop.f32.mrb[0].mxu0
      %1266 = vmatprep.mubr.bf16.mxu0 0
      %1267 = vmatmul.mubr.bf16.gmra.mrb[0].mxu0 %v1181
      %v1268 = vpop.f32.mrb[0].mxu0
      %v1269 = vadd.f32 0.0, %v1268
      %v1270 = vpop.f32.mrb[0].mxu0
      %v1271 = vpop.f32.mrb[0].mxu0
      %v1272 = vadd.f32 0.0, %v1271
      %v1273 = vpop.f32.mrb[0].mxu0
      %1274 = vmatprep.mubr.bf16.mxu0 0
      %1275 = vmatmul.mubr.bf16.gmra.mrb[0].mxu0 %v1184
      %v1276 = vpop.f32.mrb[0].mxu0
      %v1277 = vadd.f32 0.0, %v1276
      %v1278 = vpop.f32.mrb[0].mxu0
      %v1279 = vpop.f32.mrb[0].mxu0
      %v1280 = vadd.f32 0.0, %v1279
      %v1281 = vpop.f32.mrb[0].mxu0
      %1282 = vdwg.mxu0
      %v1283 = vrot.slane %v1221, 7
      %v1284 = vrot.slane %v1224, 7
      %v1285 = vrot.slane %v1229, 7
      %v1286 = vrot.slane %v1232, 7
      %v1287 = vrot.slane %v1237, 7
      %v1288 = vrot.slane %v1240, 7
      %v1289 = vrot.slane %v1245, 7
      %v1290 = vrot.slane %v1248, 7
      %v1291 = vrot.slane %v1253, 7
      %v1292 = vrot.slane %v1256, 7
      %v1293 = vrot.slane %v1261, 7
      %v1294 = vrot.slane %v1264, 7
      %v1295 = vrot.slane %v1269, 7
      %v1296 = vrot.slane %v1272, 7
      %v1297 = vrot.slane %v1277, 7
      %v1298 = vrot.slane %v1280, 7
      %v1299 = vsel %vm700, %v1297, %v1298
      %v1300 = vsel %vm700, %v1296, %v1297
      %v1301 = vsel %vm700, %v1295, %v1296
      %v1302 = vsel %vm700, %v1294, %v1295
      %v1303 = vsel %vm700, %v1293, %v1294
      %v1304 = vsel %vm700, %v1292, %v1293
      %v1305 = vsel %vm700, %v1291, %v1292
      %v1306 = vsel %vm700, %v1290, %v1291
      %v1307 = vsel %vm700, %v1289, %v1290
      %v1308 = vsel %vm700, %v1288, %v1289
      %v1309 = vsel %vm700, %v1287, %v1288
      %v1310 = vsel %vm700, %v1286, %v1287
      %v1311 = vsel %vm700, %v1285, %v1286
      %v1312 = vsel %vm700, %v1284, %v1285
      %v1313 = vsel %vm700, %v1283, %v1284
      %v1314 = vsel %vm700, %v1298, %v1283
      %v1315 = vsel %vm733, %v1314, 0.0
      %v1316 = vsel %vm734, %v1313, 0.0
      %v1317 = vsel %vm735, %v1312, 0.0
      %v1318 = vsel %vm736, %v1311, 0.0
      %v1319 = vsel %vm737, %v1310, 0.0
      %v1320 = vsel %vm738, %v1309, 0.0
      %v1321 = vsel %vm739, %v1308, 0.0
      %v1322 = vsel %vm740, %v1307, 0.0
      %v1323 = vsel %vm741, %v1306, 0.0
      %v1324 = vsel %vm742, %v1305, 0.0
      %v1325 = vsel %vm743, %v1304, 0.0
      %v1326 = vsel %vm744, %v1303, 0.0
      %v1327 = vsel %vm745, %v1302, 0.0
      %v1328 = vsel %vm746, %v1301, 0.0
      %v1329 = vsel %vm747, %v1300, 0.0
      %v1330 = vsel %vm748, %v1299, 0.0
      %v1333 = vunpack.c.l.b16 %v1111
      %v1334 = vunpack.c.l.b16 %v1112
      %v1335 = vpack.c.b16 %v1334, %v1333
      %1337 = vmatprep.subr.bf16.mxu0 0
      %1338 = vmatpush1.bf16.msra.mxu0 %v1335
      %1339 = vmatprep.subr.bf16.mxu0 0
      %1340 = vmatpush1.bf16.msra.mxu0 0
      %1341 = vmatprep.subr.bf16.mxu0 0
      %1342 = vmatpush1.bf16.msra.mxu0 0
      %1343 = vmatprep.subr.bf16.mxu0 0
      %1344 = vmatpush1.bf16.msra.mxu0 0
      %1345 = vmatprep.subr.bf16.mxu0 0
      %1346 = vmatpush1.bf16.msra.mxu0 0
      %1347 = vmatprep.subr.bf16.mxu0 0
      %1348 = vmatpush1.bf16.msra.mxu0 0
      %1349 = vmatprep.subr.bf16.mxu0 0
      %1350 = vmatpush1.bf16.msra.mxu0 0
      %1351 = vmatprep.subr.bf16.mxu0 0
      %1352 = vmatpush1.bf16.msra.mxu0 0
      %1353 = vmatprep.subr.bf16.mxu0 0
      %1354 = vmatpush1.bf16.msra.mxu0 0
      %1355 = vmatprep.subr.bf16.mxu0 0
      %1356 = vmatpush1.bf16.msra.mxu0 0
      %1357 = vmatprep.subr.bf16.mxu0 0
      %1358 = vmatpush1.bf16.msra.mxu0 0
      %1359 = vmatprep.subr.bf16.mxu0 0
      %1360 = vmatpush1.bf16.msra.mxu0 0
      %1361 = vmatprep.subr.bf16.mxu0 0
      %1362 = vmatpush1.bf16.msra.mxu0 0
      %1363 = vmatprep.subr.bf16.mxu0 0
      %1364 = vmatpush1.bf16.msra.mxu0 0
      %1365 = vmatprep.subr.bf16.mxu0 0
      %1366 = vmatpush1.bf16.msra.mxu0 0
      %1367 = vmatprep.subr.bf16.mxu0 0
      %1368 = vmatpush1.bf16.msra.mxu0 0
      %1369 = vmatprep.mubr.bf16.mxu0 0
      %1370 = vmatmul.mubr.bf16.gmra.mrb[0].mxu0 %v1163
      %v1371 = vpop.f32.mrb[0].mxu0
      %v1372 = vadd.f32 %v1315, %v1371
      %v1373 = vpop.f32.mrb[0].mxu0
      %v1374 = vpop.f32.mrb[0].mxu0
      %v1375 = vadd.f32 %v1316, %v1374
      %v1376 = vpop.f32.mrb[0].mxu0
      %1377 = vmatprep.mubr.bf16.mxu0 0
      %1378 = vmatmul.mubr.bf16.gmra.mrb[0].mxu0 %v1166
      %v1379 = vpop.f32.mrb[0].mxu0
      %v1380 = vadd.f32 %v1317, %v1379
      %v1381 = vpop.f32.mrb[0].mxu0
      %v1382 = vpop.f32.mrb[0].mxu0
      %v1383 = vadd.f32 %v1318, %v1382
      %v1384 = vpop.f32.mrb[0].mxu0
      %1385 = vmatprep.mubr.bf16.mxu0 0
      %1386 = vmatmul.mubr.bf16.gmra.mrb[0].mxu0 %v1169
      %v1387 = vpop.f32.mrb[0].mxu0
      %v1388 = vadd.f32 %v1319, %v1387
      %v1389 = vpop.f32.mrb[0].mxu0
      %v1390 = vpop.f32.mrb[0].mxu0
      %v1391 = vadd.f32 %v1320, %v1390
      %v1392 = vpop.f32.mrb[0].mxu0
      %1393 = vmatprep.mubr.bf16.mxu0 0
      %1394 = vmatmul.mubr.bf16.gmra.mrb[0].mxu0 %v1172
      %v1395 = vpop.f32.mrb[0].mxu0
      %v1396 = vadd.f32 %v1321, %v1395
      %v1397 = vpop.f32.mrb[0].mxu0
      %v1398 = vpop.f32.mrb[0].mxu0
      %v1399 = vadd.f32 %v1322, %v1398
      %v1400 = vpop.f32.mrb[0].mxu0
      %1401 = vmatprep.mubr.bf16.mxu0 0
      %1402 = vmatmul.mubr.bf16.gmra.mrb[0].mxu0 %v1175
      %v1403 = vpop.f32.mrb[0].mxu0
      %v1404 = vadd.f32 %v1323, %v1403
      %v1405 = vpop.f32.mrb[0].mxu0
      %v1406 = vpop.f32.mrb[0].mxu0
      %v1407 = vadd.f32 %v1324, %v1406
      %v1408 = vpop.f32.mrb[0].mxu0
      %1409 = vmatprep.mubr.bf16.mxu0 0
      %1410 = vmatmul.mubr.bf16.gmra.mrb[0].mxu0 %v1178
      %v1411 = vpop.f32.mrb[0].mxu0
      %v1412 = vadd.f32 %v1325, %v1411
      %v1413 = vpop.f32.mrb[0].mxu0
      %v1414 = vpop.f32.mrb[0].mxu0
      %v1415 = vadd.f32 %v1326, %v1414
      %v1416 = vpop.f32.mrb[0].mxu0
      %1417 = vmatprep.mubr.bf16.mxu0 0
      %1418 = vmatmul.mubr.bf16.gmra.mrb[0].mxu0 %v1181
      %v1419 = vpop.f32.mrb[0].mxu0
      %v1420 = vadd.f32 %v1327, %v1419
      %v1421 = vpop.f32.mrb[0].mxu0
      %v1422 = vpop.f32.mrb[0].mxu0
      %v1423 = vadd.f32 %v1328, %v1422
      %v1424 = vpop.f32.mrb[0].mxu0
      %1425 = vmatprep.mubr.bf16.mxu0 0
      %1426 = vmatmul.mubr.bf16.gmra.mrb[0].mxu0 %v1184
      %v1427 = vpop.f32.mrb[0].mxu0
      %v1428 = vadd.f32 %v1329, %v1427
      %v1429 = vpop.f32.mrb[0].mxu0
      %v1430 = vpop.f32.mrb[0].mxu0
      %v1431 = vadd.f32 %v1330, %v1430
      %v1432 = vpop.f32.mrb[0].mxu0
      %1433 = vdwg.mxu0
      %s1434 = scalar_lea.vmem %s1, 40
      %v1435 = vld [vmem:[%s1434] sm:$0xf]
      %v1436 = vld [vmem:[%s1434 + $0x4] sm:$0xf]
      %v1439 = vunpack.c.l.b16 %v1435
      %v1440 = vunpack.c.l.b16 %v1436
      %v1441 = vpack.c.b16 %v1440, %v1439
      %1443 = vmatprep.subr.bf16.mxu0 0
      %1444 = vmatpush1.bf16.msra.mxu0 %v1441
      %1445 = vmatprep.subr.bf16.mxu0 0
      %1446 = vmatpush1.bf16.msra.mxu0 0
      %1447 = vmatprep.subr.bf16.mxu0 0
      %1448 = vmatpush1.bf16.msra.mxu0 0
      %1449 = vmatprep.subr.bf16.mxu0 0
      %1450 = vmatpush1.bf16.msra.mxu0 0
      %1451 = vmatprep.subr.bf16.mxu0 0
      %1452 = vmatpush1.bf16.msra.mxu0 0
      %1453 = vmatprep.subr.bf16.mxu0 0
      %1454 = vmatpush1.bf16.msra.mxu0 0
      %1455 = vmatprep.subr.bf16.mxu0 0
      %1456 = vmatpush1.bf16.msra.mxu0 0
      %1457 = vmatprep.subr.bf16.mxu0 0
      %1458 = vmatpush1.bf16.msra.mxu0 0
      %1459 = vmatprep.subr.bf16.mxu0 0
      %1460 = vmatpush1.bf16.msra.mxu0 0
      %1461 = vmatprep.subr.bf16.mxu0 0
      %1462 = vmatpush1.bf16.msra.mxu0 0
      %1463 = vmatprep.subr.bf16.mxu0 0
      %1464 = vmatpush1.bf16.msra.mxu0 0
      %1465 = vmatprep.subr.bf16.mxu0 0
      %1466 = vmatpush1.bf16.msra.mxu0 0
      %1467 = vmatprep.subr.bf16.mxu0 0
      %1468 = vmatpush1.bf16.msra.mxu0 0
      %1469 = vmatprep.subr.bf16.mxu0 0
      %1470 = vmatpush1.bf16.msra.mxu0 0
      %1471 = vmatprep.subr.bf16.mxu0 0
      %1472 = vmatpush1.bf16.msra.mxu0 0
      %1473 = vmatprep.subr.bf16.mxu0 0
      %1474 = vmatpush1.bf16.msra.mxu0 0
      %1475 = vmatprep.mubr.bf16.mxu0 0
      %1476 = vmatmul.mubr.bf16.gmra.mrb[0].mxu0 %v1163
      %v1477 = vpop.f32.mrb[0].mxu0
      %v1478 = vadd.f32 0.0, %v1477
      %v1479 = vpop.f32.mrb[0].mxu0
      %v1480 = vpop.f32.mrb[0].mxu0
      %v1481 = vadd.f32 0.0, %v1480
      %v1482 = vpop.f32.mrb[0].mxu0
      %1483 = vmatprep.mubr.bf16.mxu0 0
      %1484 = vmatmul.mubr.bf16.gmra.mrb[0].mxu0 %v1166
      %v1485 = vpop.f32.mrb[0].mxu0
      %v1486 = vadd.f32 0.0, %v1485
      %v1487 = vpop.f32.mrb[0].mxu0
      %v1488 = vpop.f32.mrb[0].mxu0
      %v1489 = vadd.f32 0.0, %v1488
      %v1490 = vpop.f32.mrb[0].mxu0
      %1491 = vmatprep.mubr.bf16.mxu0 0
      %1492 = vmatmul.mubr.bf16.gmra.mrb[0].mxu0 %v1169
      %v1493 = vpop.f32.mrb[0].mxu0
      %v1494 = vadd.f32 0.0, %v1493
      %v1495 = vpop.f32.mrb[0].mxu0
      %v1496 = vpop.f32.mrb[0].mxu0
      %v1497 = vadd.f32 0.0, %v1496
      %v1498 = vpop.f32.mrb[0].mxu0
      %1499 = vmatprep.mubr.bf16.mxu0 0
      %1500 = vmatmul.mubr.bf16.gmra.mrb[0].mxu0 %v1172
      %v1501 = vpop.f32.mrb[0].mxu0
      %v1502 = vadd.f32 0.0, %v1501
      %v1503 = vpop.f32.mrb[0].mxu0
      %v1504 = vpop.f32.mrb[0].mxu0
      %v1505 = vadd.f32 0.0, %v1504
      %v1506 = vpop.f32.mrb[0].mxu0
      %1507 = vmatprep.mubr.bf16.mxu0 0
      %1508 = vmatmul.mubr.bf16.gmra.mrb[0].mxu0 %v1175
      %v1509 = vpop.f32.mrb[0].mxu0
      %v1510 = vadd.f32 0.0, %v1509
      %v1511 = vpop.f32.mrb[0].mxu0
      %v1512 = vpop.f32.mrb[0].mxu0
      %v1513 = vadd.f32 0.0, %v1512
      %v1514 = vpop.f32.mrb[0].mxu0
      %1515 = vmatprep.mubr.bf16.mxu0 0
      %1516 = vmatmul.mubr.bf16.gmra.mrb[0].mxu0 %v1178
      %v1517 = vpop.f32.mrb[0].mxu0
      %v1518 = vadd.f32 0.0, %v1517
      %v1519 = vpop.f32.mrb[0].mxu0
      %v1520 = vpop.f32.mrb[0].mxu0
      %v1521 = vadd.f32 0.0, %v1520
      %v1522 = vpop.f32.mrb[0].mxu0
      %1523 = vmatprep.mubr.bf16.mxu0 0
      %1524 = vmatmul.mubr.bf16.gmra.mrb[0].mxu0 %v1181
      %v1525 = vpop.f32.mrb[0].mxu0
      %v1526 = vadd.f32 0.0, %v1525
      %v1527 = vpop.f32.mrb[0].mxu0
      %v1528 = vpop.f32.mrb[0].mxu0
      %v1529 = vadd.f32 0.0, %v1528
      %v1530 = vpop.f32.mrb[0].mxu0
      %1531 = vmatprep.mubr.bf16.mxu0 0
      %1532 = vmatmul.mubr.bf16.gmra.mrb[0].mxu0 %v1184
      %v1533 = vpop.f32.mrb[0].mxu0
      %v1534 = vadd.f32 0.0, %v1533
      %v1535 = vpop.f32.mrb[0].mxu0
      %v1536 = vpop.f32.mrb[0].mxu0
      %v1537 = vadd.f32 0.0, %v1536
      %v1538 = vpop.f32.mrb[0].mxu0
      %1539 = vdwg.mxu0
      %v1540 = vrot.slane %v1478, 1
      %v1541 = vrot.slane %v1481, 1
      %v1542 = vrot.slane %v1486, 1
      %v1543 = vrot.slane %v1489, 1
      %v1544 = vrot.slane %v1494, 1
      %v1545 = vrot.slane %v1497, 1
      %v1546 = vrot.slane %v1502, 1
      %v1547 = vrot.slane %v1505, 1
      %v1548 = vrot.slane %v1510, 1
      %v1549 = vrot.slane %v1513, 1
      %v1550 = vrot.slane %v1518, 1
      %v1551 = vrot.slane %v1521, 1
      %v1552 = vrot.slane %v1526, 1
      %v1553 = vrot.slane %v1529, 1
      %v1554 = vrot.slane %v1534, 1
      %v1555 = vrot.slane %v1537, 1
      %v1556 = vsel %vm990, %v1554, %v1555
      %v1557 = vsel %vm990, %v1553, %v1554
      %v1558 = vsel %vm990, %v1552, %v1553
      %v1559 = vsel %vm990, %v1551, %v1552
      %v1560 = vsel %vm990, %v1550, %v1551
      %v1561 = vsel %vm990, %v1549, %v1550
      %v1562 = vsel %vm990, %v1548, %v1549
      %v1563 = vsel %vm990, %v1547, %v1548
      %v1564 = vsel %vm990, %v1546, %v1547
      %v1565 = vsel %vm990, %v1545, %v1546
      %v1566 = vsel %vm990, %v1544, %v1545
      %v1567 = vsel %vm990, %v1543, %v1544
      %v1568 = vsel %vm990, %v1542, %v1543
      %v1569 = vsel %vm990, %v1541, %v1542
      %v1570 = vsel %vm990, %v1540, %v1541
      %v1571 = vsel %vm990, %v1555, %v1540
      %v1572 = vsel %vm1023, %v1570, 0.0
      %v1573 = vsel %vm1024, %v1569, 0.0
      %v1574 = vsel %vm1025, %v1568, 0.0
      %v1575 = vsel %vm1026, %v1567, 0.0
      %v1576 = vsel %vm1027, %v1566, 0.0
      %v1577 = vsel %vm1028, %v1565, 0.0
      %v1578 = vsel %vm1029, %v1564, 0.0
      %v1579 = vsel %vm1030, %v1563, 0.0
      %v1580 = vsel %vm1031, %v1562, 0.0
      %v1581 = vsel %vm1032, %v1561, 0.0
      %v1582 = vsel %vm1033, %v1560, 0.0
      %v1583 = vsel %vm1034, %v1559, 0.0
      %v1584 = vsel %vm1035, %v1558, 0.0
      %v1585 = vsel %vm1036, %v1557, 0.0
      %v1586 = vsel %vm1037, %v1556, 0.0
      %v1587 = vsel %vm1038, %v1571, 0.0
      %v1588 = vadd.f32 %v1372, %v1572
      %v1589 = vadd.f32 %v1375, %v1573
      %v1590 = vadd.f32 %v1380, %v1574
      %v1591 = vadd.f32 %v1383, %v1575
      %v1592 = vadd.f32 %v1388, %v1576
      %v1593 = vadd.f32 %v1391, %v1577
      %v1594 = vadd.f32 %v1396, %v1578
      %v1595 = vadd.f32 %v1399, %v1579
      %v1596 = vadd.f32 %v1404, %v1580
      %v1597 = vadd.f32 %v1407, %v1581
      %v1598 = vadd.f32 %v1412, %v1582
      %v1599 = vadd.f32 %v1415, %v1583
      %v1600 = vadd.f32 %v1420, %v1584
      %v1601 = vadd.f32 %v1423, %v1585
      %v1602 = vadd.f32 %v1428, %v1586
      %v1603 = vadd.f32 %v1431, %v1587
      %v1604 = vld [vmem:[#allocation2] sm:$0xff]
      %v1605 = vld [vmem:[#allocation2 + $0x8] sm:$0xff]
      %v1606 = vld [vmem:[#allocation2 + $0x10] sm:$0xff]
      %v1607 = vld [vmem:[#allocation2 + $0x18] sm:$0xff]
      %v1608 = vld [vmem:[#allocation2 + $0x20] sm:$0xff]
      %v1609 = vld [vmem:[#allocation2 + $0x28] sm:$0xff]
      %v1610 = vld [vmem:[#allocation2 + $0x30] sm:$0xff]
      %v1611 = vld [vmem:[#allocation2 + $0x38] sm:$0xff]
      %v1612 = vld [vmem:[#allocation2 + $0x40] sm:$0xff]
      %v1613 = vld [vmem:[#allocation2 + $0x48] sm:$0xff]
      %v1614 = vld [vmem:[#allocation2 + $0x50] sm:$0xff]
      %v1615 = vld [vmem:[#allocation2 + $0x58] sm:$0xff]
      %v1616 = vld [vmem:[#allocation2 + $0x60] sm:$0xff]
      %v1617 = vld [vmem:[#allocation2 + $0x68] sm:$0xff]
      %v1618 = vld [vmem:[#allocation2 + $0x70] sm:$0xff]
      %v1619 = vld [vmem:[#allocation2 + $0x78] sm:$0xff]
      %v1620 = vadd.f32 %v1604, %v1588
      %v1621 = vadd.f32 %v1605, %v1589
      %v1622 = vadd.f32 %v1606, %v1590
      %v1623 = vadd.f32 %v1607, %v1591
      %v1624 = vadd.f32 %v1608, %v1592
      %v1625 = vadd.f32 %v1609, %v1593
      %v1626 = vadd.f32 %v1610, %v1594
      %v1627 = vadd.f32 %v1611, %v1595
      %v1628 = vadd.f32 %v1612, %v1596
      %v1629 = vadd.f32 %v1613, %v1597
      %v1630 = vadd.f32 %v1614, %v1598
      %v1631 = vadd.f32 %v1615, %v1599
      %v1632 = vadd.f32 %v1616, %v1600
      %v1633 = vadd.f32 %v1617, %v1601
      %v1634 = vadd.f32 %v1618, %v1602
      %v1635 = vadd.f32 %v1619, %v1603
      %1636 = vst [vmem:[#allocation2] sm:$0xff] %v1620
      %1637 = vst [vmem:[#allocation2 + $0x8] sm:$0xff] %v1621
      %1638 = vst [vmem:[#allocation2 + $0x10] sm:$0xff] %v1622
      %1639 = vst [vmem:[#allocation2 + $0x18] sm:$0xff] %v1623
      %1640 = vst [vmem:[#allocation2 + $0x20] sm:$0xff] %v1624
      %1641 = vst [vmem:[#allocation2 + $0x28] sm:$0xff] %v1625
      %1642 = vst [vmem:[#allocation2 + $0x30] sm:$0xff] %v1626
      %1643 = vst [vmem:[#allocation2 + $0x38] sm:$0xff] %v1627
      %1644 = vst [vmem:[#allocation2 + $0x40] sm:$0xff] %v1628
      %1645 = vst [vmem:[#allocation2 + $0x48] sm:$0xff] %v1629
      %1646 = vst [vmem:[#allocation2 + $0x50] sm:$0xff] %v1630
      %1647 = vst [vmem:[#allocation2 + $0x58] sm:$0xff] %v1631
      %1648 = vst [vmem:[#allocation2 + $0x60] sm:$0xff] %v1632
      %1649 = vst [vmem:[#allocation2 + $0x68] sm:$0xff] %v1633
      %1650 = vst [vmem:[#allocation2 + $0x70] sm:$0xff] %v1634
      %1651 = vst [vmem:[#allocation2 + $0x78] sm:$0xff] %v1635
      %s1652 = sadd.s32 %s1087, 2
      %s1653 = smul.u32 %s1652, 16
      %s1654 = sshra.s32 %s1653, 3
      %s1655 = sand.u32 %s1653, 7
      %s1656 = smul.addr %s1654, 4
      %s1657 = scalar_lea.vmem %s237, %s1656
      %v1658 = vld [vmem:[%s1657] sm:$0xf]
      %v1659 = vld [vmem:[%s1657 + $0x4] sm:$0xf]
      %v1660 = vld [vmem:[%s1657 + $0x8] sm:$0xf]
      %v1661 = vld [vmem:[%s1657 + $0xc] sm:$0xf]
      %v1662 = vld [vmem:[%s1657 + $0x10] sm:$0xf]
      %v1663 = vld [vmem:[%s1657 + $0x14] sm:$0xf]
      %v1664 = vld [vmem:[%s1657 + $0x18] sm:$0xf]
      %v1665 = vld [vmem:[%s1657 + $0x1c] sm:$0xf]
      %v1666 = vld [vmem:[%s1657 + $0x20] sm:$0xf]
      %v1667 = vld [vmem:[%s1657 + $0x24] sm:$0xf]
      %v1668 = vld [vmem:[%s1657 + $0x28] sm:$0xf]
      %v1669 = vld [vmem:[%s1657 + $0x2c] sm:$0xf]
      %v1670 = vld [vmem:[%s1657 + $0x30] sm:$0xf]
      %v1671 = vld [vmem:[%s1657 + $0x34] sm:$0xf]
      %v1672 = vld [vmem:[%s1657 + $0x38] sm:$0xf]
      %v1673 = vld [vmem:[%s1657 + $0x3c] sm:$0xf]
      %s1674 = scalar_lea.vmem %s1, 56
      %v1675 = vld [vmem:[%s1674] sm:$0xf]
      %v1676 = vld [vmem:[%s1674 + $0x4] sm:$0xf]
      %s1677 = scalar_lea.vmem %s1, 48
      %v1678 = vld [vmem:[%s1677] sm:$0xf]
      %v1679 = vld [vmem:[%s1677 + $0x4] sm:$0xf]
      %v1696 = vunpack.c.l.b16 %v1658
      %v1697 = vunpack.c.l.b16 %v1659
      %v1698 = vunpack.c.l.b16 %v1660
      %v1699 = vunpack.c.l.b16 %v1661
      %v1700 = vunpack.c.l.b16 %v1662
      %v1701 = vunpack.c.l.b16 %v1663
      %v1702 = vunpack.c.l.b16 %v1664
      %v1703 = vunpack.c.l.b16 %v1665
      %v1704 = vunpack.c.l.b16 %v1666
      %v1705 = vunpack.c.l.b16 %v1667
      %v1706 = vunpack.c.l.b16 %v1668
      %v1707 = vunpack.c.l.b16 %v1669
      %v1708 = vunpack.c.l.b16 %v1670
      %v1709 = vunpack.c.l.b16 %v1671
      %v1710 = vunpack.c.l.b16 %v1672
      %v1711 = vunpack.c.l.b16 %v1673
      %v1712 = vpack.c.b16 %v1697, %v1696
      %v1713 = vpack.c.b16 %v1699, %v1698
      %v1714 = vpack.c.b16 %v1701, %v1700
      %v1715 = vpack.c.b16 %v1703, %v1702
      %v1716 = vpack.c.b16 %v1705, %v1704
      %v1717 = vpack.c.b16 %v1707, %v1706
      %v1718 = vpack.c.b16 %v1709, %v1708
      %v1719 = vpack.c.b16 %v1711, %v1710
      %v1722 = vunpack.c.l.b16 %v1678
      %v1723 = vunpack.c.l.b16 %v1679
      %v1724 = vpack.c.b16 %v1723, %v1722
      %v1727 = vsel %vm562, %v1712, 0
      %v1730 = vsel %vm562, %v1713, 0
      %v1733 = vsel %vm562, %v1714, 0
      %v1736 = vsel %vm562, %v1715, 0
      %v1739 = vsel %vm562, %v1716, 0
      %v1742 = vsel %vm562, %v1717, 0
      %v1745 = vsel %vm562, %v1718, 0
      %v1748 = vsel %vm562, %v1719, 0
      %1750 = vmatprep.subr.bf16.mxu0 0
      %1751 = vmatpush1.bf16.msra.mxu0 %v1724
      %1752 = vmatprep.subr.bf16.mxu0 0
      %1753 = vmatpush1.bf16.msra.mxu0 0
      %1754 = vmatprep.subr.bf16.mxu0 0
      %1755 = vmatpush1.bf16.msra.mxu0 0
      %1756 = vmatprep.subr.bf16.mxu0 0
      %1757 = vmatpush1.bf16.msra.mxu0 0
      %1758 = vmatprep.subr.bf16.mxu0 0
      %1759 = vmatpush1.bf16.msra.mxu0 0
      %1760 = vmatprep.subr.bf16.mxu0 0
      %1761 = vmatpush1.bf16.msra.mxu0 0
      %1762 = vmatprep.subr.bf16.mxu0 0
      %1763 = vmatpush1.bf16.msra.mxu0 0
      %1764 = vmatprep.subr.bf16.mxu0 0
      %1765 = vmatpush1.bf16.msra.mxu0 0
      %1766 = vmatprep.subr.bf16.mxu0 0
      %1767 = vmatpush1.bf16.msra.mxu0 0
      %1768 = vmatprep.subr.bf16.mxu0 0
      %1769 = vmatpush1.bf16.msra.mxu0 0
      %1770 = vmatprep.subr.bf16.mxu0 0
      %1771 = vmatpush1.bf16.msra.mxu0 0
      %1772 = vmatprep.subr.bf16.mxu0 0
      %1773 = vmatpush1.bf16.msra.mxu0 0
      %1774 = vmatprep.subr.bf16.mxu0 0
      %1775 = vmatpush1.bf16.msra.mxu0 0
      %1776 = vmatprep.subr.bf16.mxu0 0
      %1777 = vmatpush1.bf16.msra.mxu0 0
      %1778 = vmatprep.subr.bf16.mxu0 0
      %1779 = vmatpush1.bf16.msra.mxu0 0
      %1780 = vmatprep.subr.bf16.mxu0 0
      %1781 = vmatpush1.bf16.msra.mxu0 0
      %1782 = vmatprep.mubr.bf16.mxu0 0
      %1783 = vmatmul.mubr.bf16.gmra.mrb[0].mxu0 %v1727
      %v1784 = vpop.f32.mrb[0].mxu0
      %v1785 = vadd.f32 0.0, %v1784
      %v1786 = vpop.f32.mrb[0].mxu0
      %v1787 = vpop.f32.mrb[0].mxu0
      %v1788 = vadd.f32 0.0, %v1787
      %v1789 = vpop.f32.mrb[0].mxu0
      %1790 = vmatprep.mubr.bf16.mxu0 0
      %1791 = vmatmul.mubr.bf16.gmra.mrb[0].mxu0 %v1730
      %v1792 = vpop.f32.mrb[0].mxu0
      %v1793 = vadd.f32 0.0, %v1792
      %v1794 = vpop.f32.mrb[0].mxu0
      %v1795 = vpop.f32.mrb[0].mxu0
      %v1796 = vadd.f32 0.0, %v1795
      %v1797 = vpop.f32.mrb[0].mxu0
      %1798 = vmatprep.mubr.bf16.mxu0 0
      %1799 = vmatmul.mubr.bf16.gmra.mrb[0].mxu0 %v1733
      %v1800 = vpop.f32.mrb[0].mxu0
      %v1801 = vadd.f32 0.0, %v1800
      %v1802 = vpop.f32.mrb[0].mxu0
      %v1803 = vpop.f32.mrb[0].mxu0
      %v1804 = vadd.f32 0.0, %v1803
      %v1805 = vpop.f32.mrb[0].mxu0
      %1806 = vmatprep.mubr.bf16.mxu0 0
      %1807 = vmatmul.mubr.bf16.gmra.mrb[0].mxu0 %v1736
      %v1808 = vpop.f32.mrb[0].mxu0
      %v1809 = vadd.f32 0.0, %v1808
      %v1810 = vpop.f32.mrb[0].mxu0
      %v1811 = vpop.f32.mrb[0].mxu0
      %v1812 = vadd.f32 0.0, %v1811
      %v1813 = vpop.f32.mrb[0].mxu0
      %1814 = vmatprep.mubr.bf16.mxu0 0
      %1815 = vmatmul.mubr.bf16.gmra.mrb[0].mxu0 %v1739
      %v1816 = vpop.f32.mrb[0].mxu0
      %v1817 = vadd.f32 0.0, %v1816
      %v1818 = vpop.f32.mrb[0].mxu0
      %v1819 = vpop.f32.mrb[0].mxu0
      %v1820 = vadd.f32 0.0, %v1819
      %v1821 = vpop.f32.mrb[0].mxu0
      %1822 = vmatprep.mubr.bf16.mxu0 0
      %1823 = vmatmul.mubr.bf16.gmra.mrb[0].mxu0 %v1742
      %v1824 = vpop.f32.mrb[0].mxu0
      %v1825 = vadd.f32 0.0, %v1824
      %v1826 = vpop.f32.mrb[0].mxu0
      %v1827 = vpop.f32.mrb[0].mxu0
      %v1828 = vadd.f32 0.0, %v1827
      %v1829 = vpop.f32.mrb[0].mxu0
      %1830 = vmatprep.mubr.bf16.mxu0 0
      %1831 = vmatmul.mubr.bf16.gmra.mrb[0].mxu0 %v1745
      %v1832 = vpop.f32.mrb[0].mxu0
      %v1833 = vadd.f32 0.0, %v1832
      %v1834 = vpop.f32.mrb[0].mxu0
      %v1835 = vpop.f32.mrb[0].mxu0
      %v1836 = vadd.f32 0.0, %v1835
      %v1837 = vpop.f32.mrb[0].mxu0
      %1838 = vmatprep.mubr.bf16.mxu0 0
      %1839 = vmatmul.mubr.bf16.gmra.mrb[0].mxu0 %v1748
      %v1840 = vpop.f32.mrb[0].mxu0
      %v1841 = vadd.f32 0.0, %v1840
      %v1842 = vpop.f32.mrb[0].mxu0
      %v1843 = vpop.f32.mrb[0].mxu0
      %v1844 = vadd.f32 0.0, %v1843
      %v1845 = vpop.f32.mrb[0].mxu0
      %1846 = vdwg.mxu0
      %v1847 = vrot.slane %v1785, 7
      %v1848 = vrot.slane %v1788, 7
      %v1849 = vrot.slane %v1793, 7
      %v1850 = vrot.slane %v1796, 7
      %v1851 = vrot.slane %v1801, 7
      %v1852 = vrot.slane %v1804, 7
      %v1853 = vrot.slane %v1809, 7
      %v1854 = vrot.slane %v1812, 7
      %v1855 = vrot.slane %v1817, 7
      %v1856 = vrot.slane %v1820, 7
      %v1857 = vrot.slane %v1825, 7
      %v1858 = vrot.slane %v1828, 7
      %v1859 = vrot.slane %v1833, 7
      %v1860 = vrot.slane %v1836, 7
      %v1861 = vrot.slane %v1841, 7
      %v1862 = vrot.slane %v1844, 7
      %v1863 = vsel %vm700, %v1861, %v1862
      %v1864 = vsel %vm700, %v1860, %v1861
      %v1865 = vsel %vm700, %v1859, %v1860
      %v1866 = vsel %vm700, %v1858, %v1859
      %v1867 = vsel %vm700, %v1857, %v1858
      %v1868 = vsel %vm700, %v1856, %v1857
      %v1869 = vsel %vm700, %v1855, %v1856
      %v1870 = vsel %vm700, %v1854, %v1855
      %v1871 = vsel %vm700, %v1853, %v1854
      %v1872 = vsel %vm700, %v1852, %v1853
      %v1873 = vsel %vm700, %v1851, %v1852
      %v1874 = vsel %vm700, %v1850, %v1851
      %v1875 = vsel %vm700, %v1849, %v1850
      %v1876 = vsel %vm700, %v1848, %v1849
      %v1877 = vsel %vm700, %v1847, %v1848
      %v1878 = vsel %vm700, %v1862, %v1847
      %v1879 = vsel %vm733, %v1878, 0.0
      %v1880 = vsel %vm734, %v1877, 0.0
      %v1881 = vsel %vm735, %v1876, 0.0
      %v1882 = vsel %vm736, %v1875, 0.0
      %v1883 = vsel %vm737, %v1874, 0.0
      %v1884 = vsel %vm738, %v1873, 0.0
      %v1885 = vsel %vm739, %v1872, 0.0
      %v1886 = vsel %vm740, %v1871, 0.0
      %v1887 = vsel %vm741, %v1870, 0.0
      %v1888 = vsel %vm742, %v1869, 0.0
      %v1889 = vsel %vm743, %v1868, 0.0
      %v1890 = vsel %vm744, %v1867, 0.0
      %v1891 = vsel %vm745, %v1866, 0.0
      %v1892 = vsel %vm746, %v1865, 0.0
      %v1893 = vsel %vm747, %v1864, 0.0
      %v1894 = vsel %vm748, %v1863, 0.0
      %v1897 = vunpack.c.l.b16 %v1675
      %v1898 = vunpack.c.l.b16 %v1676
      %v1899 = vpack.c.b16 %v1898, %v1897
      %1901 = vmatprep.subr.bf16.mxu0 0
      %1902 = vmatpush1.bf16.msra.mxu0 %v1899
      %1903 = vmatprep.subr.bf16.mxu0 0
      %1904 = vmatpush1.bf16.msra.mxu0 0
      %1905 = vmatprep.subr.bf16.mxu0 0
      %1906 = vmatpush1.bf16.msra.mxu0 0
      %1907 = vmatprep.subr.bf16.mxu0 0
      %1908 = vmatpush1.bf16.msra.mxu0 0
      %1909 = vmatprep.subr.bf16.mxu0 0
      %1910 = vmatpush1.bf16.msra.mxu0 0
      %1911 = vmatprep.subr.bf16.mxu0 0
      %1912 = vmatpush1.bf16.msra.mxu0 0
      %1913 = vmatprep.subr.bf16.mxu0 0
      %1914 = vmatpush1.bf16.msra.mxu0 0
      %1915 = vmatprep.subr.bf16.mxu0 0
      %1916 = vmatpush1.bf16.msra.mxu0 0
      %1917 = vmatprep.subr.bf16.mxu0 0
      %1918 = vmatpush1.bf16.msra.mxu0 0
      %1919 = vmatprep.subr.bf16.mxu0 0
      %1920 = vmatpush1.bf16.msra.mxu0 0
      %1921 = vmatprep.subr.bf16.mxu0 0
      %1922 = vmatpush1.bf16.msra.mxu0 0
      %1923 = vmatprep.subr.bf16.mxu0 0
      %1924 = vmatpush1.bf16.msra.mxu0 0
      %1925 = vmatprep.subr.bf16.mxu0 0
      %1926 = vmatpush1.bf16.msra.mxu0 0
      %1927 = vmatprep.subr.bf16.mxu0 0
      %1928 = vmatpush1.bf16.msra.mxu0 0
      %1929 = vmatprep.subr.bf16.mxu0 0
      %1930 = vmatpush1.bf16.msra.mxu0 0
      %1931 = vmatprep.subr.bf16.mxu0 0
      %1932 = vmatpush1.bf16.msra.mxu0 0
      %1933 = vmatprep.mubr.bf16.mxu0 0
      %1934 = vmatmul.mubr.bf16.gmra.mrb[0].mxu0 %v1727
      %v1935 = vpop.f32.mrb[0].mxu0
      %v1936 = vadd.f32 %v1879, %v1935
      %v1937 = vpop.f32.mrb[0].mxu0
      %v1938 = vpop.f32.mrb[0].mxu0
      %v1939 = vadd.f32 %v1880, %v1938
      %v1940 = vpop.f32.mrb[0].mxu0
      %1941 = vmatprep.mubr.bf16.mxu0 0
      %1942 = vmatmul.mubr.bf16.gmra.mrb[0].mxu0 %v1730
      %v1943 = vpop.f32.mrb[0].mxu0
      %v1944 = vadd.f32 %v1881, %v1943
      %v1945 = vpop.f32.mrb[0].mxu0
      %v1946 = vpop.f32.mrb[0].mxu0
      %v1947 = vadd.f32 %v1882, %v1946
      %v1948 = vpop.f32.mrb[0].mxu0
      %1949 = vmatprep.mubr.bf16.mxu0 0
      %1950 = vmatmul.mubr.bf16.gmra.mrb[0].mxu0 %v1733
      %v1951 = vpop.f32.mrb[0].mxu0
      %v1952 = vadd.f32 %v1883, %v1951
      %v1953 = vpop.f32.mrb[0].mxu0
      %v1954 = vpop.f32.mrb[0].mxu0
      %v1955 = vadd.f32 %v1884, %v1954
      %v1956 = vpop.f32.mrb[0].mxu0
      %1957 = vmatprep.mubr.bf16.mxu0 0
      %1958 = vmatmul.mubr.bf16.gmra.mrb[0].mxu0 %v1736
      %v1959 = vpop.f32.mrb[0].mxu0
      %v1960 = vadd.f32 %v1885, %v1959
      %v1961 = vpop.f32.mrb[0].mxu0
      %v1962 = vpop.f32.mrb[0].mxu0
      %v1963 = vadd.f32 %v1886, %v1962
      %v1964 = vpop.f32.mrb[0].mxu0
      %1965 = vmatprep.mubr.bf16.mxu0 0
      %1966 = vmatmul.mubr.bf16.gmra.mrb[0].mxu0 %v1739
      %v1967 = vpop.f32.mrb[0].mxu0
      %v1968 = vadd.f32 %v1887, %v1967
      %v1969 = vpop.f32.mrb[0].mxu0
      %v1970 = vpop.f32.mrb[0].mxu0
      %v1971 = vadd.f32 %v1888, %v1970
      %v1972 = vpop.f32.mrb[0].mxu0
      %1973 = vmatprep.mubr.bf16.mxu0 0
      %1974 = vmatmul.mubr.bf16.gmra.mrb[0].mxu0 %v1742
      %v1975 = vpop.f32.mrb[0].mxu0
      %v1976 = vadd.f32 %v1889, %v1975
      %v1977 = vpop.f32.mrb[0].mxu0
      %v1978 = vpop.f32.mrb[0].mxu0
      %v1979 = vadd.f32 %v1890, %v1978
      %v1980 = vpop.f32.mrb[0].mxu0
      %1981 = vmatprep.mubr.bf16.mxu0 0
      %1982 = vmatmul.mubr.bf16.gmra.mrb[0].mxu0 %v1745
      %v1983 = vpop.f32.mrb[0].mxu0
      %v1984 = vadd.f32 %v1891, %v1983
      %v1985 = vpop.f32.mrb[0].mxu0
      %v1986 = vpop.f32.mrb[0].mxu0
      %v1987 = vadd.f32 %v1892, %v1986
      %v1988 = vpop.f32.mrb[0].mxu0
      %1989 = vmatprep.mubr.bf16.mxu0 0
      %1990 = vmatmul.mubr.bf16.gmra.mrb[0].mxu0 %v1748
      %v1991 = vpop.f32.mrb[0].mxu0
      %v1992 = vadd.f32 %v1893, %v1991
      %v1993 = vpop.f32.mrb[0].mxu0
      %v1994 = vpop.f32.mrb[0].mxu0
      %v1995 = vadd.f32 %v1894, %v1994
      %v1996 = vpop.f32.mrb[0].mxu0
      %1997 = vdwg.mxu0
      %s1998 = scalar_lea.vmem %s1, 64
      %v1999 = vld [vmem:[%s1998] sm:$0xf]
      %v2000 = vld [vmem:[%s1998 + $0x4] sm:$0xf]
      %v2003 = vunpack.c.l.b16 %v1999
      %v2004 = vunpack.c.l.b16 %v2000
      %v2005 = vpack.c.b16 %v2004, %v2003
      %2007 = vmatprep.subr.bf16.mxu0 0
      %2008 = vmatpush1.bf16.msra.mxu0 %v2005
      %2009 = vmatprep.subr.bf16.mxu0 0
      %2010 = vmatpush1.bf16.msra.mxu0 0
      %2011 = vmatprep.subr.bf16.mxu0 0
      %2012 = vmatpush1.bf16.msra.mxu0 0
      %2013 = vmatprep.subr.bf16.mxu0 0
      %2014 = vmatpush1.bf16.msra.mxu0 0
      %2015 = vmatprep.subr.bf16.mxu0 0
      %2016 = vmatpush1.bf16.msra.mxu0 0
      %2017 = vmatprep.subr.bf16.mxu0 0
      %2018 = vmatpush1.bf16.msra.mxu0 0
      %2019 = vmatprep.subr.bf16.mxu0 0
      %2020 = vmatpush1.bf16.msra.mxu0 0
      %2021 = vmatprep.subr.bf16.mxu0 0
      %2022 = vmatpush1.bf16.msra.mxu0 0
      %2023 = vmatprep.subr.bf16.mxu0 0
      %2024 = vmatpush1.bf16.msra.mxu0 0
      %2025 = vmatprep.subr.bf16.mxu0 0
      %2026 = vmatpush1.bf16.msra.mxu0 0
      %2027 = vmatprep.subr.bf16.mxu0 0
      %2028 = vmatpush1.bf16.msra.mxu0 0
      %2029 = vmatprep.subr.bf16.mxu0 0
      %2030 = vmatpush1.bf16.msra.mxu0 0
      %2031 = vmatprep.subr.bf16.mxu0 0
      %2032 = vmatpush1.bf16.msra.mxu0 0
      %2033 = vmatprep.subr.bf16.mxu0 0
      %2034 = vmatpush1.bf16.msra.mxu0 0
      %2035 = vmatprep.subr.bf16.mxu0 0
      %2036 = vmatpush1.bf16.msra.mxu0 0
      %2037 = vmatprep.subr.bf16.mxu0 0
      %2038 = vmatpush1.bf16.msra.mxu0 0
      %2039 = vmatprep.mubr.bf16.mxu0 0
      %2040 = vmatmul.mubr.bf16.gmra.mrb[0].mxu0 %v1727
      %v2041 = vpop.f32.mrb[0].mxu0
      %v2042 = vadd.f32 0.0, %v2041
      %v2043 = vpop.f32.mrb[0].mxu0
      %v2044 = vpop.f32.mrb[0].mxu0
      %v2045 = vadd.f32 0.0, %v2044
      %v2046 = vpop.f32.mrb[0].mxu0
      %2047 = vmatprep.mubr.bf16.mxu0 0
      %2048 = vmatmul.mubr.bf16.gmra.mrb[0].mxu0 %v1730
      %v2049 = vpop.f32.mrb[0].mxu0
      %v2050 = vadd.f32 0.0, %v2049
      %v2051 = vpop.f32.mrb[0].mxu0
      %v2052 = vpop.f32.mrb[0].mxu0
      %v2053 = vadd.f32 0.0, %v2052
      %v2054 = vpop.f32.mrb[0].mxu0
      %2055 = vmatprep.mubr.bf16.mxu0 0
      %2056 = vmatmul.mubr.bf16.gmra.mrb[0].mxu0 %v1733
      %v2057 = vpop.f32.mrb[0].mxu0
      %v2058 = vadd.f32 0.0, %v2057
      %v2059 = vpop.f32.mrb[0].mxu0
      %v2060 = vpop.f32.mrb[0].mxu0
      %v2061 = vadd.f32 0.0, %v2060
      %v2062 = vpop.f32.mrb[0].mxu0
      %2063 = vmatprep.mubr.bf16.mxu0 0
      %2064 = vmatmul.mubr.bf16.gmra.mrb[0].mxu0 %v1736
      %v2065 = vpop.f32.mrb[0].mxu0
      %v2066 = vadd.f32 0.0, %v2065
      %v2067 = vpop.f32.mrb[0].mxu0
      %v2068 = vpop.f32.mrb[0].mxu0
      %v2069 = vadd.f32 0.0, %v2068
      %v2070 = vpop.f32.mrb[0].mxu0
      %2071 = vmatprep.mubr.bf16.mxu0 0
      %2072 = vmatmul.mubr.bf16.gmra.mrb[0].mxu0 %v1739
      %v2073 = vpop.f32.mrb[0].mxu0
      %v2074 = vadd.f32 0.0, %v2073
      %v2075 = vpop.f32.mrb[0].mxu0
      %v2076 = vpop.f32.mrb[0].mxu0
      %v2077 = vadd.f32 0.0, %v2076
      %v2078 = vpop.f32.mrb[0].mxu0
      %2079 = vmatprep.mubr.bf16.mxu0 0
      %2080 = vmatmul.mubr.bf16.gmra.mrb[0].mxu0 %v1742
      %v2081 = vpop.f32.mrb[0].mxu0
      %v2082 = vadd.f32 0.0, %v2081
      %v2083 = vpop.f32.mrb[0].mxu0
      %v2084 = vpop.f32.mrb[0].mxu0
      %v2085 = vadd.f32 0.0, %v2084
      %v2086 = vpop.f32.mrb[0].mxu0
      %2087 = vmatprep.mubr.bf16.mxu0 0
      %2088 = vmatmul.mubr.bf16.gmra.mrb[0].mxu0 %v1745
      %v2089 = vpop.f32.mrb[0].mxu0
      %v2090 = vadd.f32 0.0, %v2089
      %v2091 = vpop.f32.mrb[0].mxu0
      %v2092 = vpop.f32.mrb[0].mxu0
      %v2093 = vadd.f32 0.0, %v2092
      %v2094 = vpop.f32.mrb[0].mxu0
      %2095 = vmatprep.mubr.bf16.mxu0 0
      %2096 = vmatmul.mubr.bf16.gmra.mrb[0].mxu0 %v1748
      %v2097 = vpop.f32.mrb[0].mxu0
      %v2098 = vadd.f32 0.0, %v2097
      %v2099 = vpop.f32.mrb[0].mxu0
      %v2100 = vpop.f32.mrb[0].mxu0
      %v2101 = vadd.f32 0.0, %v2100
      %v2102 = vpop.f32.mrb[0].mxu0
      %2103 = vdwg.mxu0
      %v2104 = vrot.slane %v2042, 1
      %v2105 = vrot.slane %v2045, 1
      %v2106 = vrot.slane %v2050, 1
      %v2107 = vrot.slane %v2053, 1
      %v2108 = vrot.slane %v2058, 1
      %v2109 = vrot.slane %v2061, 1
      %v2110 = vrot.slane %v2066, 1
      %v2111 = vrot.slane %v2069, 1
      %v2112 = vrot.slane %v2074, 1
      %v2113 = vrot.slane %v2077, 1
      %v2114 = vrot.slane %v2082, 1
      %v2115 = vrot.slane %v2085, 1
      %v2116 = vrot.slane %v2090, 1
      %v2117 = vrot.slane %v2093, 1
      %v2118 = vrot.slane %v2098, 1
      %v2119 = vrot.slane %v2101, 1
      %v2120 = vsel %vm990, %v2118, %v2119
      %v2121 = vsel %vm990, %v2117, %v2118
      %v2122 = vsel %vm990, %v2116, %v2117
      %v2123 = vsel %vm990, %v2115, %v2116
      %v2124 = vsel %vm990, %v2114, %v2115
      %v2125 = vsel %vm990, %v2113, %v2114
      %v2126 = vsel %vm990, %v2112, %v2113
      %v2127 = vsel %vm990, %v2111, %v2112
      %v2128 = vsel %vm990, %v2110, %v2111
      %v2129 = vsel %vm990, %v2109, %v2110
      %v2130 = vsel %vm990, %v2108, %v2109
      %v2131 = vsel %vm990, %v2107, %v2108
      %v2132 = vsel %vm990, %v2106, %v2107
      %v2133 = vsel %vm990, %v2105, %v2106
      %v2134 = vsel %vm990, %v2104, %v2105
      %v2135 = vsel %vm990, %v2119, %v2104
      %v2136 = vsel %vm1023, %v2134, 0.0
      %v2137 = vsel %vm1024, %v2133, 0.0
      %v2138 = vsel %vm1025, %v2132, 0.0
      %v2139 = vsel %vm1026, %v2131, 0.0
      %v2140 = vsel %vm1027, %v2130, 0.0
      %v2141 = vsel %vm1028, %v2129, 0.0
      %v2142 = vsel %vm1029, %v2128, 0.0
      %v2143 = vsel %vm1030, %v2127, 0.0
      %v2144 = vsel %vm1031, %v2126, 0.0
      %v2145 = vsel %vm1032, %v2125, 0.0
      %v2146 = vsel %vm1033, %v2124, 0.0
      %v2147 = vsel %vm1034, %v2123, 0.0
      %v2148 = vsel %vm1035, %v2122, 0.0
      %v2149 = vsel %vm1036, %v2121, 0.0
      %v2150 = vsel %vm1037, %v2120, 0.0
      %v2151 = vsel %vm1038, %v2135, 0.0
      %v2152 = vadd.f32 %v1936, %v2136
      %v2153 = vadd.f32 %v1939, %v2137
      %v2154 = vadd.f32 %v1944, %v2138
      %v2155 = vadd.f32 %v1947, %v2139
      %v2156 = vadd.f32 %v1952, %v2140
      %v2157 = vadd.f32 %v1955, %v2141
      %v2158 = vadd.f32 %v1960, %v2142
      %v2159 = vadd.f32 %v1963, %v2143
      %v2160 = vadd.f32 %v1968, %v2144
      %v2161 = vadd.f32 %v1971, %v2145
      %v2162 = vadd.f32 %v1976, %v2146
      %v2163 = vadd.f32 %v1979, %v2147
      %v2164 = vadd.f32 %v1984, %v2148
      %v2165 = vadd.f32 %v1987, %v2149
      %v2166 = vadd.f32 %v1992, %v2150
      %v2167 = vadd.f32 %v1995, %v2151
      %v2168 = vld [vmem:[#allocation2] sm:$0xff]
      %v2169 = vld [vmem:[#allocation2 + $0x8] sm:$0xff]
      %v2170 = vld [vmem:[#allocation2 + $0x10] sm:$0xff]
      %v2171 = vld [vmem:[#allocation2 + $0x18] sm:$0xff]
      %v2172 = vld [vmem:[#allocation2 + $0x20] sm:$0xff]
      %v2173 = vld [vmem:[#allocation2 + $0x28] sm:$0xff]
      %v2174 = vld [vmem:[#allocation2 + $0x30] sm:$0xff]
      %v2175 = vld [vmem:[#allocation2 + $0x38] sm:$0xff]
      %v2176 = vld [vmem:[#allocation2 + $0x40] sm:$0xff]
      %v2177 = vld [vmem:[#allocation2 + $0x48] sm:$0xff]
      %v2178 = vld [vmem:[#allocation2 + $0x50] sm:$0xff]
      %v2179 = vld [vmem:[#allocation2 + $0x58] sm:$0xff]
      %v2180 = vld [vmem:[#allocation2 + $0x60] sm:$0xff]
      %v2181 = vld [vmem:[#allocation2 + $0x68] sm:$0xff]
      %v2182 = vld [vmem:[#allocation2 + $0x70] sm:$0xff]
      %v2183 = vld [vmem:[#allocation2 + $0x78] sm:$0xff]
      %v2184 = vadd.f32 %v2168, %v2152
      %v2185 = vadd.f32 %v2169, %v2153
      %v2186 = vadd.f32 %v2170, %v2154
      %v2187 = vadd.f32 %v2171, %v2155
      %v2188 = vadd.f32 %v2172, %v2156
      %v2189 = vadd.f32 %v2173, %v2157
      %v2190 = vadd.f32 %v2174, %v2158
      %v2191 = vadd.f32 %v2175, %v2159
      %v2192 = vadd.f32 %v2176, %v2160
      %v2193 = vadd.f32 %v2177, %v2161
      %v2194 = vadd.f32 %v2178, %v2162
      %v2195 = vadd.f32 %v2179, %v2163
      %v2196 = vadd.f32 %v2180, %v2164
      %v2197 = vadd.f32 %v2181, %v2165
      %v2198 = vadd.f32 %v2182, %v2166
      %v2199 = vadd.f32 %v2183, %v2167
      %2200 = vst [vmem:[#allocation2] sm:$0xff] %v2184
      %2201 = vst [vmem:[#allocation2 + $0x8] sm:$0xff] %v2185
      %2202 = vst [vmem:[#allocation2 + $0x10] sm:$0xff] %v2186
      %2203 = vst [vmem:[#allocation2 + $0x18] sm:$0xff] %v2187
      %2204 = vst [vmem:[#allocation2 + $0x20] sm:$0xff] %v2188
      %2205 = vst [vmem:[#allocation2 + $0x28] sm:$0xff] %v2189
      %2206 = vst [vmem:[#allocation2 + $0x30] sm:$0xff] %v2190
      %2207 = vst [vmem:[#allocation2 + $0x38] sm:$0xff] %v2191
      %2208 = vst [vmem:[#allocation2 + $0x40] sm:$0xff] %v2192
      %2209 = vst [vmem:[#allocation2 + $0x48] sm:$0xff] %v2193
      %2210 = vst [vmem:[#allocation2 + $0x50] sm:$0xff] %v2194
      %2211 = vst [vmem:[#allocation2 + $0x58] sm:$0xff] %v2195
      %2212 = vst [vmem:[#allocation2 + $0x60] sm:$0xff] %v2196
      %2213 = vst [vmem:[#allocation2 + $0x68] sm:$0xff] %v2197
      %2214 = vst [vmem:[#allocation2 + $0x70] sm:$0xff] %v2198
      %2215 = vst [vmem:[#allocation2 + $0x78] sm:$0xff] %v2199
      %v2216 = vld [vmem:[#allocation2] sm:$0xff]
      %v2217 = vld [vmem:[#allocation2 + $0x8] sm:$0xff]
      %v2218 = vld [vmem:[#allocation2 + $0x10] sm:$0xff]
      %v2219 = vld [vmem:[#allocation2 + $0x18] sm:$0xff]
      %v2220 = vld [vmem:[#allocation2 + $0x20] sm:$0xff]
      %v2221 = vld [vmem:[#allocation2 + $0x28] sm:$0xff]
      %v2222 = vld [vmem:[#allocation2 + $0x30] sm:$0xff]
      %v2223 = vld [vmem:[#allocation2 + $0x38] sm:$0xff]
      %v2224 = vld [vmem:[#allocation2 + $0x40] sm:$0xff]
      %v2225 = vld [vmem:[#allocation2 + $0x48] sm:$0xff]
      %v2226 = vld [vmem:[#allocation2 + $0x50] sm:$0xff]
      %v2227 = vld [vmem:[#allocation2 + $0x58] sm:$0xff]
      %v2228 = vld [vmem:[#allocation2 + $0x60] sm:$0xff]
      %v2229 = vld [vmem:[#allocation2 + $0x68] sm:$0xff]
      %v2230 = vld [vmem:[#allocation2 + $0x70] sm:$0xff]
      %v2231 = vld [vmem:[#allocation2 + $0x78] sm:$0xff]
      %v2232 = vld [vmem:[%s2] sm:$0x1]
      %v2234 = vlaneseq
      %v2235 = vshrl.u32 %v2234, 7
      %v2236 = vsub.s32 0, %v2235
      %v2237 = vrot.slane %v2232, %v2236
      %v2239 = vadd.f32 %v2216, %v2237
      %v2240 = vadd.f32 %v2217, %v2237
      %v2241 = vadd.f32 %v2218, %v2237
      %v2242 = vadd.f32 %v2219, %v2237
      %v2243 = vadd.f32 %v2220, %v2237
      %v2244 = vadd.f32 %v2221, %v2237
      %v2245 = vadd.f32 %v2222, %v2237
      %v2246 = vadd.f32 %v2223, %v2237
      %v2247 = vadd.f32 %v2224, %v2237
      %v2248 = vadd.f32 %v2225, %v2237
      %v2249 = vadd.f32 %v2226, %v2237
      %v2250 = vadd.f32 %v2227, %v2237
      %v2251 = vadd.f32 %v2228, %v2237
      %v2252 = vadd.f32 %v2229, %v2237
      %v2253 = vadd.f32 %v2230, %v2237
      %v2254 = vadd.f32 %v2231, %v2237
      %v2255 = vmax.f32 %v2239, 0.0
      %v2256 = vmax.f32 %v2240, 0.0
      %v2257 = vmax.f32 %v2241, 0.0
      %v2258 = vmax.f32 %v2242, 0.0
      %v2259 = vmax.f32 %v2243, 0.0
      %v2260 = vmax.f32 %v2244, 0.0
      %v2261 = vmax.f32 %v2245, 0.0
      %v2262 = vmax.f32 %v2246, 0.0
      %v2263 = vmax.f32 %v2247, 0.0
      %v2264 = vmax.f32 %v2248, 0.0
      %v2265 = vmax.f32 %v2249, 0.0
      %v2266 = vmax.f32 %v2250, 0.0
      %v2267 = vmax.f32 %v2251, 0.0
      %v2268 = vmax.f32 %v2252, 0.0
      %v2269 = vmax.f32 %v2253, 0.0
      %v2270 = vmax.f32 %v2254, 0.0
      %v2271 = vpack.c.bf16 %v2256, %v2255
      %v2272 = vpack.c.bf16 %v2258, %v2257
      %v2273 = vpack.c.bf16 %v2260, %v2259
      %v2274 = vpack.c.bf16 %v2262, %v2261
      %v2275 = vpack.c.bf16 %v2264, %v2263
      %v2276 = vpack.c.bf16 %v2266, %v2265
      %v2277 = vpack.c.bf16 %v2268, %v2267
      %v2278 = vpack.c.bf16 %v2270, %v2269
      %v2279 = vld [vmem:[%s3] sm:$0xf]
      %v2280 = vld [vmem:[%s3 + $0x4] sm:$0xf]
      %v2281 = vld [vmem:[%s3 + $0x8] sm:$0xf]
      %v2282 = vld [vmem:[%s3 + $0xc] sm:$0xf]
      %v2283 = vld [vmem:[%s3 + $0x10] sm:$0xf]
      %v2284 = vld [vmem:[%s3 + $0x14] sm:$0xf]
      %v2285 = vld [vmem:[%s3 + $0x18] sm:$0xf]
      %v2286 = vld [vmem:[%s3 + $0x1c] sm:$0xf]
      %v2287 = vld [vmem:[%s3 + $0x20] sm:$0xf]
      %v2288 = vld [vmem:[%s3 + $0x24] sm:$0xf]
      %v2289 = vld [vmem:[%s3 + $0x28] sm:$0xf]
      %v2290 = vld [vmem:[%s3 + $0x2c] sm:$0xf]
      %v2291 = vld [vmem:[%s3 + $0x30] sm:$0xf]
      %v2292 = vld [vmem:[%s3 + $0x34] sm:$0xf]
      %v2293 = vld [vmem:[%s3 + $0x38] sm:$0xf]
      %v2294 = vld [vmem:[%s3 + $0x3c] sm:$0xf]
      %v2295 = vld [vmem:[%s4] sm:$0x1]
      %v2297 = vlaneseq
      %v2298 = vshrl.u32 %v2297, 7
      %v2299 = vsub.s32 0, %v2298
      %v2300 = vrot.slane %v2295, %v2299
      %v2318 = vunpack.c.l.b16 %v2279
      %v2319 = vunpack.c.l.b16 %v2280
      %v2320 = vunpack.c.l.b16 %v2281
      %v2321 = vunpack.c.l.b16 %v2282
      %v2322 = vunpack.c.l.b16 %v2283
      %v2323 = vunpack.c.l.b16 %v2284
      %v2324 = vunpack.c.l.b16 %v2285
      %v2325 = vunpack.c.l.b16 %v2286
      %v2326 = vunpack.c.l.b16 %v2287
      %v2327 = vunpack.c.l.b16 %v2288
      %v2328 = vunpack.c.l.b16 %v2289
      %v2329 = vunpack.c.l.b16 %v2290
      %v2330 = vunpack.c.l.b16 %v2291
      %v2331 = vunpack.c.l.b16 %v2292
      %v2332 = vunpack.c.l.b16 %v2293
      %v2333 = vunpack.c.l.b16 %v2294
      %v2334 = vpack.c.b16 %v2319, %v2318
      %v2335 = vpack.c.b16 %v2321, %v2320
      %v2336 = vpack.c.b16 %v2323, %v2322
      %v2337 = vpack.c.b16 %v2325, %v2324
      %v2338 = vpack.c.b16 %v2327, %v2326
      %v2339 = vpack.c.b16 %v2329, %v2328
      %v2340 = vpack.c.b16 %v2331, %v2330
      %v2341 = vpack.c.b16 %v2333, %v2332
      %2350 = vmatprep.subr.bf16.mxu0 0
      %2351 = vmatpush1.bf16.msra.mxu0 %v2334
      %2352 = vmatprep.subr.bf16.mxu0 0
      %2353 = vmatpush1.bf16.msra.mxu0 %v2335
      %2354 = vmatprep.subr.bf16.mxu0 0
      %2355 = vmatpush1.bf16.msra.mxu0 %v2336
      %2356 = vmatprep.subr.bf16.mxu0 0
      %2357 = vmatpush1.bf16.msra.mxu0 %v2337
      %2358 = vmatprep.subr.bf16.mxu0 0
      %2359 = vmatpush1.bf16.msra.mxu0 %v2338
      %2360 = vmatprep.subr.bf16.mxu0 0
      %2361 = vmatpush1.bf16.msra.mxu0 %v2339
      %2362 = vmatprep.subr.bf16.mxu0 0
      %2363 = vmatpush1.bf16.msra.mxu0 %v2340
      %2364 = vmatprep.subr.bf16.mxu0 0
      %2365 = vmatpush1.bf16.msra.mxu0 %v2341
      %2366 = vmatprep.subr.bf16.mxu0 0
      %2367 = vmatpush1.bf16.msra.mxu0 0
      %2368 = vmatprep.subr.bf16.mxu0 0
      %2369 = vmatpush1.bf16.msra.mxu0 0
      %2370 = vmatprep.subr.bf16.mxu0 0
      %2371 = vmatpush1.bf16.msra.mxu0 0
      %2372 = vmatprep.subr.bf16.mxu0 0
      %2373 = vmatpush1.bf16.msra.mxu0 0
      %2374 = vmatprep.subr.bf16.mxu0 0
      %2375 = vmatpush1.bf16.msra.mxu0 0
      %2376 = vmatprep.subr.bf16.mxu0 0
      %2377 = vmatpush1.bf16.msra.mxu0 0
      %2378 = vmatprep.subr.bf16.mxu0 0
      %2379 = vmatpush1.bf16.msra.mxu0 0
      %2380 = vmatprep.subr.bf16.mxu0 0
      %2381 = vmatpush1.bf16.msra.mxu0 0
      %2382 = vmatprep.mubr.bf16.mxu0 0
      %2383 = vmatmul.mubr.bf16.gmra.mrb[0].mxu0 %v2271
      %v2384 = vpop.f32.mrb[0].mxu0
      %v2385 = vadd.f32 %v2300, %v2384
      %v2386 = vpop.f32.mrb[0].mxu0
      %v2387 = vpop.f32.mrb[0].mxu0
      %v2388 = vadd.f32 %v2300, %v2387
      %v2389 = vpop.f32.mrb[0].mxu0
      %2390 = vmatprep.mubr.bf16.mxu0 0
      %2391 = vmatmul.mubr.bf16.gmra.mrb[0].mxu0 %v2272
      %v2392 = vpop.f32.mrb[0].mxu0
      %v2393 = vadd.f32 %v2300, %v2392
      %v2394 = vpop.f32.mrb[0].mxu0
      %v2395 = vpop.f32.mrb[0].mxu0
      %v2396 = vadd.f32 %v2300, %v2395
      %v2397 = vpop.f32.mrb[0].mxu0
      %2398 = vmatprep.mubr.bf16.mxu0 0
      %2399 = vmatmul.mubr.bf16.gmra.mrb[0].mxu0 %v2273
      %v2400 = vpop.f32.mrb[0].mxu0
      %v2401 = vadd.f32 %v2300, %v2400
      %v2402 = vpop.f32.mrb[0].mxu0
      %v2403 = vpop.f32.mrb[0].mxu0
      %v2404 = vadd.f32 %v2300, %v2403
      %v2405 = vpop.f32.mrb[0].mxu0
      %2406 = vmatprep.mubr.bf16.mxu0 0
      %2407 = vmatmul.mubr.bf16.gmra.mrb[0].mxu0 %v2274
      %v2408 = vpop.f32.mrb[0].mxu0
      %v2409 = vadd.f32 %v2300, %v2408
      %v2410 = vpop.f32.mrb[0].mxu0
      %v2411 = vpop.f32.mrb[0].mxu0
      %v2412 = vadd.f32 %v2300, %v2411
      %v2413 = vpop.f32.mrb[0].mxu0
      %2414 = vmatprep.mubr.bf16.mxu0 0
      %2415 = vmatmul.mubr.bf16.gmra.mrb[0].mxu0 %v2275
      %v2416 = vpop.f32.mrb[0].mxu0
      %v2417 = vadd.f32 %v2300, %v2416
      %v2418 = vpop.f32.mrb[0].mxu0
      %v2419 = vpop.f32.mrb[0].mxu0
      %v2420 = vadd.f32 %v2300, %v2419
      %v2421 = vpop.f32.mrb[0].mxu0
      %2422 = vmatprep.mubr.bf16.mxu0 0
      %2423 = vmatmul.mubr.bf16.gmra.mrb[0].mxu0 %v2276
      %v2424 = vpop.f32.mrb[0].mxu0
      %v2425 = vadd.f32 %v2300, %v2424
      %v2426 = vpop.f32.mrb[0].mxu0
      %v2427 = vpop.f32.mrb[0].mxu0
      %v2428 = vadd.f32 %v2300, %v2427
      %v2429 = vpop.f32.mrb[0].mxu0
      %2430 = vmatprep.mubr.bf16.mxu0 0
      %2431 = vmatmul.mubr.bf16.gmra.mrb[0].mxu0 %v2277
      %v2432 = vpop.f32.mrb[0].mxu0
      %v2433 = vadd.f32 %v2300, %v2432
      %v2434 = vpop.f32.mrb[0].mxu0
      %v2435 = vpop.f32.mrb[0].mxu0
      %v2436 = vadd.f32 %v2300, %v2435
      %v2437 = vpop.f32.mrb[0].mxu0
      %2438 = vmatprep.mubr.bf16.mxu0 0
      %2439 = vmatmul.mubr.bf16.gmra.mrb[0].mxu0 %v2278
      %v2440 = vpop.f32.mrb[0].mxu0
      %v2441 = vadd.f32 %v2300, %v2440
      %v2442 = vpop.f32.mrb[0].mxu0
      %v2443 = vpop.f32.mrb[0].mxu0
      %v2444 = vadd.f32 %v2300, %v2443
      %v2445 = vpop.f32.mrb[0].mxu0
      %2446 = vdwg.mxu0
      %v2447 = vpack.c.bf16 %v2388, %v2385
      %v2448 = vpack.c.bf16 %v2396, %v2393
      %v2449 = vpack.c.bf16 %v2404, %v2401
      %v2450 = vpack.c.bf16 %v2412, %v2409
      %v2451 = vpack.c.bf16 %v2420, %v2417
      %v2452 = vpack.c.bf16 %v2428, %v2425
      %v2453 = vpack.c.bf16 %v2436, %v2433
      %v2454 = vpack.c.bf16 %v2444, %v2441
      %v2463 = vunpack.c.l.b16 %v2447
      %v2464 = vunpack.c.h.b16 %v2447
      %v2465 = vunpack.c.l.b16 %v2448
      %v2466 = vunpack.c.h.b16 %v2448
      %v2467 = vunpack.c.l.b16 %v2449
      %v2468 = vunpack.c.h.b16 %v2449
      %v2469 = vunpack.c.l.b16 %v2450
      %v2470 = vunpack.c.h.b16 %v2450
      %v2471 = vunpack.c.l.b16 %v2451
      %v2472 = vunpack.c.h.b16 %v2451
      %v2473 = vunpack.c.l.b16 %v2452
      %v2474 = vunpack.c.h.b16 %v2452
      %v2475 = vunpack.c.l.b16 %v2453
      %v2476 = vunpack.c.h.b16 %v2453
      %v2477 = vunpack.c.l.b16 %v2454
      %v2478 = vunpack.c.h.b16 %v2454
      %v2479 = vpack.c.b16 %v2463, %v2463
      %v2480 = vpack.c.b16 %v2464, %v2464
      %v2481 = vpack.c.b16 %v2465, %v2465
      %v2482 = vpack.c.b16 %v2466, %v2466
      %v2483 = vpack.c.b16 %v2467, %v2467
      %v2484 = vpack.c.b16 %v2468, %v2468
      %v2485 = vpack.c.b16 %v2469, %v2469
      %v2486 = vpack.c.b16 %v2470, %v2470
      %v2487 = vpack.c.b16 %v2471, %v2471
      %v2488 = vpack.c.b16 %v2472, %v2472
      %v2489 = vpack.c.b16 %v2473, %v2473
      %v2490 = vpack.c.b16 %v2474, %v2474
      %v2491 = vpack.c.b16 %v2475, %v2475
      %v2492 = vpack.c.b16 %v2476, %v2476
      %v2493 = vpack.c.b16 %v2477, %v2477
      %v2494 = vpack.c.b16 %v2478, %v2478
      %2511 = vst [vmem:[%s246] sm:$0xf] %v2479
      %2512 = vst [vmem:[%s246 + $0x4] sm:$0xf] %v2480
      %2513 = vst [vmem:[%s246 + $0x8] sm:$0xf] %v2481
      %2514 = vst [vmem:[%s246 + $0xc] sm:$0xf] %v2482
      %2515 = vst [vmem:[%s246 + $0x10] sm:$0xf] %v2483
      %2516 = vst [vmem:[%s246 + $0x14] sm:$0xf] %v2484
      %2517 = vst [vmem:[%s246 + $0x18] sm:$0xf] %v2485
      %2518 = vst [vmem:[%s246 + $0x1c] sm:$0xf] %v2486
      %2519 = vst [vmem:[%s246 + $0x20] sm:$0xf] %v2487
      %2520 = vst [vmem:[%s246 + $0x24] sm:$0xf] %v2488
      %2521 = vst [vmem:[%s246 + $0x28] sm:$0xf] %v2489
      %2522 = vst [vmem:[%s246 + $0x2c] sm:$0xf] %v2490
      %2523 = vst [vmem:[%s246 + $0x30] sm:$0xf] %v2491
      %2524 = vst [vmem:[%s246 + $0x34] sm:$0xf] %v2492
      %2525 = vst [vmem:[%s246 + $0x38] sm:$0xf] %v2493
      %2526 = vst [vmem:[%s246 + $0x3c] sm:$0xf] %v2494
      %s2527 = smul.u32 16, %s21
      %p2528 = scmp.lt.s32.totalorder %s20, 1
      %s2529 = scalar_select %p2528, %s20, 1
      %p2530 = scmp.lt.s32.totalorder %s2527, 31
      %s2531 = scalar_select %p2530, %s2527, 31
      %s2532 = smul.addr %s2529, 32
      %s2533 = sadd.s32 %s2531, %s2532
      %s2534 = smul.addr %s2533, 4
      %s2535 = scalar_lea.vmem %s5, %s2534
      // Predicated region
      $region41: #{fcn_head_forward.1} parent=39 // pred_check
        %p2536 = pneg %p158
      $region42: #{fcn_head_forward.1} parent=39 // pred_check_branch
        %2538 = sbr.rel (%p2536) target = $region44
      $region43: #{fcn_head_forward.1} parent=39 // pred_region
        %s2539 = smul.u32 16, %s21
      $region44: #{fcn_head_forward.1} parent=39 // pred_fallthru
        _
    $region40: #{fcn_head_forward.1} parent=5 // pred_fallthru
      _
    %p2540 = scmp.le.s32.totalorder 2, %s11
    // Predicated region
    $region45: #{fcn_head_forward.1} parent=5 // pred_check
      %p2541 = pneg %p2540
    $region46: #{fcn_head_forward.1} parent=5 // pred_check_branch
      %2543 = sbr.rel (%p2541) target = $region48
    $region47: #{fcn_head_forward.1} parent=5 // pred_region
      %s2544 = ssub.s32 %s11, 2
      // Predicated region
      $region49: #{fcn_head_forward.1} parent=47 // pred_check
        %p2545 = pneg %p164
      $region50: #{fcn_head_forward.1} parent=47 // pred_check_branch
        %2547 = sbr.rel (%p2545) target = $region52
      $region51: #{fcn_head_forward.1} parent=47 // pred_region
        %s2548 = smul.u32 16, %s23
        %p2549 = scmp.lt.s32.totalorder %s22, 1
        %s2550 = scalar_select %p2549, %s22, 1
        %p2551 = scmp.lt.s32.totalorder %s2548, 31
        %s2552 = scalar_select %p2551, %s2548, 31
        %s2553 = smul.addr %s2550, 32
        %s2554 = sadd.s32 %s2552, %s2553
        %s2555 = smul.addr %s2554, 4
        %s2556 = scalar_lea.vmem %s5, %s2555
      $region52: #{fcn_head_forward.1} parent=47 // pred_fallthru
        _
    $region48: #{fcn_head_forward.1} parent=5 // pred_fallthru
      _
  $region6: #{fcn_head_forward.1} parent=0 // loop_footer
    %s15 = sadd.s32 1, %s11
  $region7: #{fcn_head_forward.1} parent=0 // loop_footer_branch
    %10 = sbr.rel target = $region3
  $region8: #{fcn_head_forward.1} parent=0 // loop_exit
    _

</llo_original>
